<compile_context>
chip_gen: v7x
topology: tpu7x:2x2x1
jax: 0.10.0
libtpu: 0.0.40
codegen_flags: <defaults>
</compile_context>

<pallas_src>
import functools
import math

import jax
import jax.numpy as jnp
from jax import lax
from jax.experimental import pallas as pl
from jax.experimental.pallas import tpu as pltpu


# ----------------------------------------------------------------------------
# Kernel 1: fused QKV projection + rotary embedding (RoPE in the matmul epilogue)
# ----------------------------------------------------------------------------
def _qkv_rope_kernel(x_ref, w_ref, cos_ref, sin_ref, *rest,
                     num_heads, half, use_roll):
    if use_roll:
        o_ref, acc_ref = rest
        rot_ref = None
    else:
        rot_ref, o_ref, acc_ref = rest

    g = pl.program_id(1)        # which (q|k|v, head) group: q: [0,H), k: [H,2H), v: [2H,3H)
    ki = pl.program_id(3)       # contraction (model-dim) tile
    nk = pl.num_programs(3)

    @pl.when(ki == 0)
    def _():
        acc_ref[...] = jnp.zeros_like(acc_ref)

    # Native-dtype MXU inputs, f32 accumulation.
    acc_ref[...] += jnp.dot(x_ref[0], w_ref[0],
                            preferred_element_type=jnp.float32)

    # q / k groups: apply rotary once per element, as a matmul epilogue.
    @pl.when(jnp.logical_and(ki == nk - 1, g < 2 * num_heads))
    def _():
        t = acc_ref[...]                                   # (ts, Dh) f32
        if use_roll:
            # rotate_half via the XLU (lane roll); sign is folded into sin_ref.
            rolled = pltpu.roll(t, shift=half, axis=1)
        else:
            # head_dim not lane-aligned (e.g. toy Dh=8): tiny (Dh,Dh) permutation
            # matmul -- amortized once per element here, NOT per attention tile.
            rolled = jnp.dot(t, rot_ref[...], preferred_element_type=jnp.float32)
        o_ref[0, 0] = (t * cos_ref[...] + rolled * sin_ref[...]).astype(o_ref.dtype)

    # v groups: plain copy of the accumulator.
    @pl.when(jnp.logical_and(ki == nk - 1, g >= 2 * num_heads))
    def _():
        o_ref[0, 0] = acc_ref[...].astype(o_ref.dtype)


def qkv_rope_projection(x, w3, cos, sin_signed, rot_perm, *,
                        num_heads, head_dim, seq_tile=256, k_tile=512):
    """x: (B, S, D). w3: (3H, D, Dh). cos/sin_signed: (S, Dh). -> (B, 3H, S, Dh)."""
    b, s, d = x.shape
    g3 = 3 * num_heads
    ts = min(s, seq_tile)
    dk = min(d, k_tile)
    assert s % ts == 0 and d % dk == 0
    use_roll = (head_dim % 128 == 0)      # lane-aligned -> XLU roll path

    kernel = functools.partial(_qkv_rope_kernel, num_heads=num_heads,
                               half=head_dim // 2, use_roll=use_roll)

    in_specs = [
        pl.BlockSpec((1, ts, dk), lambda bi, g, si, ki: (bi, si, ki)),
        pl.BlockSpec((1, dk, head_dim), lambda bi, g, si, ki: (g, ki, 0)),
        pl.BlockSpec((ts, head_dim), lambda bi, g, si, ki: (si, 0)),
        pl.BlockSpec((ts, head_dim), lambda bi, g, si, ki: (si, 0)),
    ]
    args = [x, w3, cos, sin_signed]
    if not use_roll:
        in_specs.append(pl.BlockSpec((head_dim, head_dim),
                                     lambda bi, g, si, ki: (0, 0)))
        args.append(rot_perm)

    return pl.pallas_call(
        kernel,
        out_shape=jax.ShapeDtypeStruct((b, g3, s, head_dim), x.dtype),
        grid=(b, g3, s // ts, d // dk),
        in_specs=in_specs,
        out_specs=pl.BlockSpec((1, 1, ts, head_dim),
                               lambda bi, g, si, ki: (bi, g, si, 0)),
        scratch_shapes=[pltpu.VMEM((ts, head_dim), jnp.float32)],
        compiler_params=pltpu.CompilerParams(
            dimension_semantics=("parallel", "parallel", "parallel", "arbitrary")),
    )(*args)


# ----------------------------------------------------------------------------
# Kernel 2: flash-style causal attention (online softmax, causal tile skipping)
# ----------------------------------------------------------------------------
def _flash_attn_kernel(q_ref, k_ref, v_ref, o_ref, m_sc, l_sc, acc_sc, *,
                       scale, blk_q, blk_k):
    qi = pl.program_id(2)
    ki = pl.program_id(3)
    n_kv = pl.num_programs(3)

    @pl.when(ki == 0)
    def _():
        m_sc[...] = jnp.full_like(m_sc, -jnp.inf)
        l_sc[...] = jnp.zeros_like(l_sc)
        acc_sc[...] = jnp.zeros_like(acc_sc)

    # Causal skip: this KV tile contributes only if its first key position is
    # <= the last query position of the q tile (removes ~half the matmuls).
    @pl.when(ki * blk_k <= qi * blk_q + (blk_q - 1))
    def _():
        q = q_ref[0, 0]        # (blk_q, Dh), native dtype straight into the MXU
        k = k_ref[0, 0]        # (blk_k, Dh)
        v = v_ref[0, 0]

        # scores = q @ k^T (contract over Dh), f32 accumulation on the MXU.
        s = lax.dot_general(q, k, (((1,), (1,)), ((), ())),
                            preferred_element_type=jnp.float32) * scale

        # Causal mask in global coordinates (same additive-min semantics as the
        # PyTorch module).  Only diagonal tiles actually get masked entries.
        row = qi * blk_q + lax.broadcasted_iota(jnp.int32, (blk_q, blk_k), 0)
        col = ki * blk_k + lax.broadcasted_iota(jnp.int32, (blk_q, blk_k), 1)
        s = jnp.where(col > row, jnp.finfo(jnp.float32).min, s)

        # Online softmax update.
        m_prev = m_sc[...]
        m_new = jnp.maximum(m_prev, jnp.max(s, axis=-1, keepdims=True))
        alpha = jnp.exp(m_prev - m_new)
        p = jnp.exp(s - m_new)
        l_sc[...] = alpha * l_sc[...] + jnp.sum(p, axis=-1, keepdims=True)
        acc_sc[...] = alpha * acc_sc[...] + jnp.dot(
            p.astype(v.dtype), v, preferred_element_type=jnp.float32)
        m_sc[...] = m_new

    @pl.when(ki == n_kv - 1)
    def _():
        # Normalize only at finalize (divide is out of the KV inner loop).
        o_ref[0, 0] = (acc_sc[...] *
                       pl.reciprocal(l_sc[...], approx=False)).astype(o_ref.dtype)


def flash_attention(qkv, *, num_heads, head_dim, blk_q=128, blk_k=128):
    """qkv: (B, 3H, S, Dh) with q heads at [0,H), k at [H,2H), v at [2H,3H)."""
    b, g3, s, dh = qkv.shape
    assert g3 == 3 * num_heads and dh == head_dim
    blk_q = min(s, blk_q)
    blk_k = min(s, blk_k)
    assert s % blk_q == 0 and s % blk_k == 0
    h = num_heads
    scale = 1.0 / math.sqrt(head_dim)

    kernel = functools.partial(_flash_attn_kernel, scale=scale,
                               blk_q=blk_q, blk_k=blk_k)
    return pl.pallas_call(
        kernel,
        out_shape=jax.ShapeDtypeStruct((b, num_heads, s, dh), qkv.dtype),
        grid=(b, num_heads, s // blk_q, s // blk_k),
        in_specs=[
            pl.BlockSpec((1, 1, blk_q, dh),
                         lambda bi, hi, qi, ki: (bi, hi, qi, 0)),          # Q
            pl.BlockSpec((1, 1, blk_k, dh),
                         lambda bi, hi, qi, ki: (bi, h + hi, ki, 0)),      # K
            pl.BlockSpec((1, 1, blk_k, dh),
                         lambda bi, hi, qi, ki: (bi, 2 * h + hi, ki, 0)),  # V
        ],
        out_specs=pl.BlockSpec((1, 1, blk_q, dh),
                               lambda bi, hi, qi, ki: (bi, hi, qi, 0)),
        scratch_shapes=[
            pltpu.VMEM((blk_q, 1), jnp.float32),    # running max m
            pltpu.VMEM((blk_q, 1), jnp.float32),    # running sum l
            pltpu.VMEM((blk_q, dh), jnp.float32),   # output accumulator
        ],
        compiler_params=pltpu.CompilerParams(
            dimension_semantics=("parallel", "parallel", "parallel", "arbitrary")),
    )(qkv, qkv, qkv)


# ----------------------------------------------------------------------------
# Kernel 3: output projection (head merge expressed as a reduction over heads)
# ----------------------------------------------------------------------------
def _out_proj_kernel(a_ref, w_ref, o_ref, acc_ref):
    hi = pl.program_id(3)
    nh = pl.num_programs(3)

    @pl.when(hi == 0)
    def _():
        acc_ref[...] = jnp.zeros_like(acc_ref)

    acc_ref[...] += jnp.dot(a_ref[0, 0], w_ref[0],
                            preferred_element_type=jnp.float32)

    @pl.when(hi == nh - 1)
    def _():
        o_ref[0] = acc_ref[...].astype(o_ref.dtype)


def out_projection(attn, wo3, *, seq_tile=256, n_tile=256):
    """attn: (B, H, S, Dh). wo3: (H, Dh, D). -> (B, S, D)."""
    b, h, s, dh = attn.shape
    _, _, d_out = wo3.shape
    ts = min(s, seq_tile)
    tn = min(d_out, n_tile)
    assert s % ts == 0 and d_out % tn == 0
    assert tn == d_out or tn % 128 == 0
    return pl.pallas_call(
        _out_proj_kernel,
        out_shape=jax.ShapeDtypeStruct((b, s, d_out), attn.dtype),
        grid=(b, s // ts, d_out // tn, h),
        in_specs=[
            pl.BlockSpec((1, 1, ts, dh), lambda bi, si, ni, hi: (bi, hi, si, 0)),
            pl.BlockSpec((1, dh, tn), lambda bi, si, ni, hi: (hi, 0, ni)),
        ],
        out_specs=pl.BlockSpec((1, ts, tn), lambda bi, si, ni, hi: (bi, si, ni)),
        scratch_shapes=[pltpu.VMEM((ts, tn), jnp.float32)],
        compiler_params=pltpu.CompilerParams(
            dimension_semantics=("parallel", "parallel", "parallel", "arbitrary")),
    )(attn, wo3)


# ----------------------------------------------------------------------------
# One-time parameter / table preparation (hoisted out of the forward pass)
# ----------------------------------------------------------------------------
def prepare_mha_params(w_qkv, w_out, num_heads, head_dim, max_seq_len, dtype):
    d = num_heads * head_dim
    half = head_dim // 2

    # torch (3*H*Dh, D) -> (3H, D, Dh): each (q|k|v, head) group is a contiguous
    # (D, Dh) right-hand matmul operand (no per-call weight transposes).
    w3 = jnp.transpose(w_qkv.reshape(3 * num_heads, head_dim, d), (0, 2, 1)).astype(dtype)
    # torch (D_out, H*Dh) -> (H, Dh, D_out): head merge becomes a grid reduction.
    wo3 = jnp.transpose(w_out.reshape(d, num_heads, head_dim), (1, 2, 0)).astype(dtype)

    # Rotary tables (same construction as RotaryPositionalEmbedding buffers).
    inv_freq = 1.0 / (10000.0 ** (jnp.arange(0, head_dim, 2, dtype=jnp.float32) / head_dim))
    t = jnp.arange(max_seq_len, dtype=jnp.float32)
    freqs = jnp.outer(t, inv_freq)
    emb = jnp.concatenate([freqs, freqs], axis=-1)          # (max_seq_len, Dh)
    cos = jnp.cos(emb)
    # rotate_half(x) == roll(x, Dh/2, axis=-1) * [-1]*half ++ [+1]*half.
    # Fold the sign into the sin table so the kernel only needs roll + 2 FMAs.
    sign = jnp.concatenate([-jnp.ones((half,), jnp.float32),
                            jnp.ones((half,), jnp.float32)])
    sin_signed = jnp.sin(emb) * sign[None, :]
    # Fallback roll-as-permutation for head_dim that is not lane-aligned.
    idx = jnp.arange(head_dim)
    rot_perm = jnp.zeros((head_dim, head_dim), jnp.float32)
    rot_perm = rot_perm.at[idx, (idx + half) % head_dim].set(1.0)

    return dict(w3=w3, wo3=wo3, cos=cos, sin_signed=sin_signed, rot_perm=rot_perm)


# ----------------------------------------------------------------------------
# Forward pass (all hot paths are Pallas kernels; no wrapper transposes)
# ----------------------------------------------------------------------------
def multi_head_attention(x, params, *, num_heads, head_dim,
                         seq_tile=256, k_tile=512, n_tile=256,
                         attn_blk_q=128, attn_blk_k=128):
    b, s, d = x.shape
    assert num_heads * head_dim == d
    cos = params["cos"][:s]
    sin_signed = params["sin_signed"][:s]

    qkv = qkv_rope_projection(x, params["w3"], cos, sin_signed, params["rot_perm"],
                              num_heads=num_heads, head_dim=head_dim,
                              seq_tile=seq_tile, k_tile=k_tile)      # (B, 3H, S, Dh)
    attn = flash_attention(qkv, num_heads=num_heads, head_dim=head_dim,
                           blk_q=attn_blk_q, blk_k=attn_blk_k)       # (B, H, S, Dh)
    return out_projection(attn, params["wo3"],
                          seq_tile=seq_tile, n_tile=n_tile)          # (B, S, D)


# ----------------------------------------------------------------------------
# Pure-JAX reference (mirrors the PyTorch forward, eval mode)
# ----------------------------------------------------------------------------
def reference_mha(x, w_qkv, w_out, num_heads, head_dim):
    b, s, d = x.shape
    qkv = (x @ w_qkv.T).reshape(b, s, 3, num_heads, head_dim)
    qkv = jnp.transpose(qkv, (2, 0, 3, 1, 4))
    q, k, v = qkv[0], qkv[1], qkv[2]  # (B, H, S, Dh)

    inv_freq = 1.0 / (10000.0 ** (jnp.arange(0, head_dim, 2, dtype=jnp.float32) / head_dim))
    t = jnp.arange(s, dtype=jnp.float32)
    emb = jnp.concatenate([jnp.outer(t, inv_freq)] * 2, axis=-1)
    cos = jnp.cos(emb)[None, None]
    sin = jnp.sin(emb)[None, None]

    def rot_half(xx):
        x1, x2 = jnp.split(xx, 2, axis=-1)
        return jnp.concatenate([-x2, x1], axis=-1)

    q = q * cos + rot_half(q) * sin
    k = k * cos + rot_half(k) * sin

    scores = jnp.einsum("bhqd,bhkd->bhqk", q, k) / math.sqrt(head_dim)
    mask = jnp.triu(jnp.ones((s, s), dtype=bool), k=1)
    scores = scores + jnp.where(mask, jnp.finfo(jnp.float32).min, 0.0)[None, None]
    p = jax.nn.softmax(scores, axis=-1)
    o = jnp.einsum("bhqk,bhkd->bhqd", p, v)
    o = jnp.transpose(o, (0, 2, 1, 3)).reshape(b, s, d)
    return o @ w_out.T


# ----------------------------------------------------------------------------
if __name__ == "__main__":
    B, S, H, Dh = 2, 8, 4, 8
    D = H * Dh  # 32

    key = jax.random.PRNGKey(0)
    kx, kq, ko = jax.random.split(key, 3)
    x = jax.random.normal(kx, (B, S, D), dtype=jnp.float32)

    def xavier_uniform(k, shape):
        fan_out, fan_in = shape  # torch Linear weight is (out_features, in_features)
        bound = math.sqrt(6.0 / (fan_in + fan_out))
        return jax.random.uniform(k, shape, jnp.float32, -bound, bound)

    w_qkv = xavier_uniform(kq, (3 * D, D))
    w_out = xavier_uniform(ko, (D, D))

    # One-time weight re-layout + rotary tables (hoisted out of the forward path).
    params = prepare_mha_params(w_qkv, w_out, H, Dh, max_seq_len=4096, dtype=x.dtype)

    fwd = jax.jit(functools.partial(multi_head_attention, num_heads=H, head_dim=Dh))
    out = jax.block_until_ready(fwd(x, params))

    ref = reference_mha(x, w_qkv, w_out, H, Dh)
    assert out.shape == (B, S, D)
    max_err = jnp.max(jnp.abs(out - ref))
    assert jnp.allclose(out, ref, atol=1e-3, rtol=1e-3), f"max abs diff {max_err}"
    print("KERNEL_OK")
</pallas_src>

<mosaic_0001>
module attributes {stable_mosaic.version = 11 : i64} {
  func.func @_qkv_rope_kernel(%arg0: i32, %arg1: i32, %arg2: i32, %arg3: i32, %arg4: memref<1x8x32xf32, #tpu.memory_space<vmem>>, %arg5: memref<1x32x8xf32, #tpu.memory_space<vmem>>, %arg6: memref<8x8xf32, #tpu.memory_space<vmem>>, %arg7: memref<8x8xf32, #tpu.memory_space<vmem>>, %arg8: memref<8x8xf32, #tpu.memory_space<vmem>>, %arg9: memref<1x1x8x8xf32, #tpu.memory_space<vmem>>, %arg10: memref<8x8xf32, #tpu.memory_space<vmem>>) attributes {dimension_semantics = [#tpu.dimension_semantics<parallel>, #tpu.dimension_semantics<parallel>, #tpu.dimension_semantics<parallel>, #tpu.dimension_semantics<arbitrary>], iteration_bounds = array<i64: 2, 12, 1, 1>, scalar_prefetch = 0 : i64, scratch_operands = 1 : i64, tpu.core_type = #tpu.core_type<tc>, window_params = [{transform_indices = @transform_0, window_bounds = array<i64: 1, 8, 32>}, {transform_indices = @transform_1, window_bounds = array<i64: 1, 32, 8>}, {transform_indices = @transform_2, window_bounds = array<i64: 8, 8>}, {transform_indices = @transform_3, window_bounds = array<i64: 8, 8>}, {pipeline_mode = #tpu.pipeline_mode<synchronous>, transform_indices = @transform_4, window_bounds = array<i64: 8, 8>}, {transform_indices = @transform_5, window_bounds = array<i64: 1, 1, 8, 8>}]} {
    %c0_i32 = arith.constant 0 : i32
    %0 = arith.cmpi eq, %arg3, %c0_i32 : i32
    %1 = arith.extui %0 : i1 to i32
    %c0_i32_0 = arith.constant 0 : i32
    %2 = arith.cmpi ne, %1, %c0_i32_0 : i32
    scf.if %2 {
      %cst_15 = arith.constant 0.000000e+00 : f32
      %21 = vector.broadcast %cst_15 : f32 to vector<8x8xf32>
      %c0_16 = arith.constant 0 : index
      %c0_17 = arith.constant 0 : index
      %22 = vector.load %arg10[%c0_16, %c0_17] : memref<8x8xf32, #tpu.memory_space<vmem>>, vector<8x8xf32>
      tpu.vector_store %arg10[%c0_16, %c0_17], %21 {strides = array<i32>} : memref<8x8xf32, #tpu.memory_space<vmem>>, vector<8x8xf32>,
    } else {
    }
    %c0 = arith.constant 0 : index
    %c0_1 = arith.constant 0 : index
    %3 = vector.load %arg10[%c0, %c0_1] : memref<8x8xf32, #tpu.memory_space<vmem>>, vector<8x8xf32>
    %c0_2 = arith.constant 0 : index
    %c0_3 = arith.constant 0 : index
    %c0_4 = arith.constant 0 : index
    %4 = vector.load %arg4[%c0_2, %c0_3, %c0_4] : memref<1x8x32xf32, #tpu.memory_space<vmem>>, vector<1x8x32xf32>
    %5 = vector.shape_cast %4 : vector<1x8x32xf32> to vector<8x32xf32>
    %c0_5 = arith.constant 0 : index
    %c0_6 = arith.constant 0 : index
    %c0_7 = arith.constant 0 : index
    %6 = vector.load %arg5[%c0_5, %c0_6, %c0_7] : memref<1x32x8xf32, #tpu.memory_space<vmem>>, vector<1x32x8xf32>
    %7 = vector.shape_cast %6 : vector<1x32x8xf32> to vector<32x8xf32>
    %cst = arith.constant dense<0.000000e+00> : vector<8x8xf32>
    %8 = tpu.matmul %5, %7, %cst {dimension_numbers = #tpu.dot_dimension_numbers<[1], [0], [0], [1], [0, 0, 1, 1], [], []>} : vector<8x32xf32>, vector<32x8xf32>, vector<8x8xf32> -> vector<8x8xf32>
    %9 = arith.addf %3, %8 : vector<8x8xf32>
    %c0_8 = arith.constant 0 : index
    %c0_9 = arith.constant 0 : index
    %10 = vector.load %arg10[%c0_8, %c0_9] : memref<8x8xf32, #tpu.memory_space<vmem>>, vector<8x8xf32>
    tpu.vector_store %arg10[%c0_8, %c0_9], %9 {strides = array<i32>} : memref<8x8xf32, #tpu.memory_space<vmem>>, vector<8x8xf32>,
    %c0_i32_10 = arith.constant 0 : i32
    %11 = arith.cmpi eq, %arg3, %c0_i32_10 : i32
    %c8_i32 = arith.constant 8 : i32
    %12 = arith.cmpi slt, %arg1, %c8_i32 : i32
    %13 = arith.andi %11, %12 : i1
    %14 = arith.extui %13 : i1 to i32
    %c0_i32_11 = arith.constant 0 : i32
    %15 = arith.cmpi ne, %14, %c0_i32_11 : i32
    scf.if %15 {
      %c0_15 = arith.constant 0 : index
      %c0_16 = arith.constant 0 : index
      %21 = vector.load %arg10[%c0_15, %c0_16] : memref<8x8xf32, #tpu.memory_space<vmem>>, vector<8x8xf32>
      %c0_17 = arith.constant 0 : index
      %c0_18 = arith.constant 0 : index
      %22 = vector.load %arg8[%c0_17, %c0_18] : memref<8x8xf32, #tpu.memory_space<vmem>>, vector<8x8xf32>
      %cst_19 = arith.constant dense<0.000000e+00> : vector<8x8xf32>
      %23 = tpu.matmul %21, %22, %cst_19 {dimension_numbers = #tpu.dot_dimension_numbers<[1], [0], [0], [1], [0, 0, 1, 1], [], []>} : vector<8x8xf32>, vector<8x8xf32>, vector<8x8xf32> -> vector<8x8xf32>
      %c0_20 = arith.constant 0 : index
      %c0_21 = arith.constant 0 : index
      %24 = vector.load %arg6[%c0_20, %c0_21] : memref<8x8xf32, #tpu.memory_space<vmem>>, vector<8x8xf32>
      %25 = arith.mulf %21, %24 : vector<8x8xf32>
      %c0_22 = arith.constant 0 : index
      %c0_23 = arith.constant 0 : index
      %26 = vector.load %arg7[%c0_22, %c0_23] : memref<8x8xf32, #tpu.memory_space<vmem>>, vector<8x8xf32>
      %27 = arith.mulf %23, %26 : vector<8x8xf32>
      %28 = arith.addf %25, %27 : vector<8x8xf32>
      %c0_24 = arith.constant 0 : index
      %c0_25 = arith.constant 0 : index
      %c0_26 = arith.constant 0 : index
      %c0_27 = arith.constant 0 : index
      %29 = vector.load %arg9[%c0_24, %c0_25, %c0_26, %c0_27] : memref<1x1x8x8xf32, #tpu.memory_space<vmem>>, vector<1x1x8x8xf32>
      %30 = vector.shape_cast %29 : vector<1x1x8x8xf32> to vector<8x8xf32>
      %31 = vector.shape_cast %28 : vector<8x8xf32> to vector<1x1x8x8xf32>
      tpu.vector_store %arg9[%c0_24, %c0_25, %c0_26, %c0_27], %31 {strides = array<i32>} : memref<1x1x8x8xf32, #tpu.memory_space<vmem>>, vector<1x1x8x8xf32>,
    } else {
    }
    %c0_i32_12 = arith.constant 0 : i32
    %16 = arith.cmpi eq, %arg3, %c0_i32_12 : i32
    %c8_i32_13 = arith.constant 8 : i32
    %17 = arith.cmpi sge, %arg1, %c8_i32_13 : i32
    %18 = arith.andi %16, %17 : i1
    %19 = arith.extui %18 : i1 to i32
    %c0_i32_14 = arith.constant 0 : i32
    %20 = arith.cmpi ne, %19, %c0_i32_14 : i32
    scf.if %20 {
      %c0_15 = arith.constant 0 : index
      %c0_16 = arith.constant 0 : index
      %21 = vector.load %arg10[%c0_15, %c0_16] : memref<8x8xf32, #tpu.memory_space<vmem>>, vector<8x8xf32>
      %c0_17 = arith.constant 0 : index
      %c0_18 = arith.constant 0 : index
      %c0_19 = arith.constant 0 : index
      %c0_20 = arith.constant 0 : index
      %22 = vector.load %arg9[%c0_17, %c0_18, %c0_19, %c0_20] : memref<1x1x8x8xf32, #tpu.memory_space<vmem>>, vector<1x1x8x8xf32>
      %23 = vector.shape_cast %22 : vector<1x1x8x8xf32> to vector<8x8xf32>
      %24 = vector.shape_cast %21 : vector<8x8xf32> to vector<1x1x8x8xf32>
      tpu.vector_store %arg9[%c0_17, %c0_18, %c0_19, %c0_20], %24 {strides = array<i32>} : memref<1x1x8x8xf32, #tpu.memory_space<vmem>>, vector<1x1x8x8xf32>,
    } else {
    }
    return
  }
  func.func @transform_0(%arg0: i32, %arg1: i32, %arg2: i32, %arg3: i32) -> (i32, i32, i32) {
    %c0_i32 = arith.constant 0 : i32
    return %arg0, %arg2, %arg3 : i32, i32, i32
  }
  func.func @transform_1(%arg0: i32, %arg1: i32, %arg2: i32, %arg3: i32) -> (i32, i32, i32) {
    %c0_i32 = arith.constant 0 : i32
    %c0_i32_0 = arith.constant 0 : i32
    return %arg1, %arg3, %c0_i32 : i32, i32, i32
  }
  func.func @transform_2(%arg0: i32, %arg1: i32, %arg2: i32, %arg3: i32) -> (i32, i32) {
    %c0_i32 = arith.constant 0 : i32
    %c0_i32_0 = arith.constant 0 : i32
    return %arg2, %c0_i32 : i32, i32
  }
  func.func @transform_3(%arg0: i32, %arg1: i32, %arg2: i32, %arg3: i32) -> (i32, i32) {
    %c0_i32 = arith.constant 0 : i32
    %c0_i32_0 = arith.constant 0 : i32
    return %arg2, %c0_i32 : i32, i32
  }
  func.func @transform_4(%arg0: i32, %arg1: i32, %arg2: i32, %arg3: i32) -> (i32, i32) {
    %c0_i32 = arith.constant 0 : i32
    %c0_i32_0 = arith.constant 0 : i32
    %c0_i32_1 = arith.constant 0 : i32
    return %c0_i32, %c0_i32_0 : i32, i32
  }
  func.func @transform_5(%arg0: i32, %arg1: i32, %arg2: i32, %arg3: i32) -> (i32, i32, i32, i32) {
    %c0_i32 = arith.constant 0 : i32
    %c0_i32_0 = arith.constant 0 : i32
    return %arg0, %arg1, %arg2, %c0_i32 : i32, i32, i32, i32
  }
}

module attributes {stable_mosaic.version = 11 : i64} {
  func.func @_flash_attn_kernel(%arg0: i32, %arg1: i32, %arg2: i32, %arg3: i32, %arg4: memref<1x1x8x8xf32, #tpu.memory_space<vmem>>, %arg5: memref<1x1x8x8xf32, #tpu.memory_space<vmem>>, %arg6: memref<1x1x8x8xf32, #tpu.memory_space<vmem>>, %arg7: memref<1x1x8x8xf32, #tpu.memory_space<vmem>>, %arg8: memref<8x1xf32, #tpu.memory_space<vmem>>, %arg9: memref<8x1xf32, #tpu.memory_space<vmem>>, %arg10: memref<8x8xf32, #tpu.memory_space<vmem>>) attributes {dimension_semantics = [#tpu.dimension_semantics<parallel>, #tpu.dimension_semantics<parallel>, #tpu.dimension_semantics<parallel>, #tpu.dimension_semantics<arbitrary>], iteration_bounds = array<i64: 2, 4, 1, 1>, scalar_prefetch = 0 : i64, scratch_operands = 3 : i64, tpu.core_type = #tpu.core_type<tc>, window_params = [{transform_indices = @transform_0, window_bounds = array<i64: 1, 1, 8, 8>}, {transform_indices = @transform_1, window_bounds = array<i64: 1, 1, 8, 8>}, {transform_indices = @transform_2, window_bounds = array<i64: 1, 1, 8, 8>}, {transform_indices = @transform_3, window_bounds = array<i64: 1, 1, 8, 8>}]} {
    %c0_i32 = arith.constant 0 : i32
    %0 = arith.cmpi eq, %arg3, %c0_i32 : i32
    %1 = arith.extui %0 : i1 to i32
    %c0_i32_0 = arith.constant 0 : i32
    %2 = arith.cmpi ne, %1, %c0_i32_0 : i32
    scf.if %2 {
      %cst = arith.constant 0xFF800000 : f32
      %12 = vector.broadcast %cst : f32 to vector<8x1xf32>
      %c0 = arith.constant 0 : index
      %c0_5 = arith.constant 0 : index
      %13 = vector.load %arg8[%c0, %c0_5] : memref<8x1xf32, #tpu.memory_space<vmem>>, vector<8x1xf32>
      tpu.vector_store %arg8[%c0, %c0_5], %12 {strides = array<i32>} : memref<8x1xf32, #tpu.memory_space<vmem>>, vector<8x1xf32>,
      %cst_6 = arith.constant 0.000000e+00 : f32
      %14 = vector.broadcast %cst_6 : f32 to vector<8x1xf32>
      %c0_7 = arith.constant 0 : index
      %c0_8 = arith.constant 0 : index
      %15 = vector.load %arg9[%c0_7, %c0_8] : memref<8x1xf32, #tpu.memory_space<vmem>>, vector<8x1xf32>
      tpu.vector_store %arg9[%c0_7, %c0_8], %14 {strides = array<i32>} : memref<8x1xf32, #tpu.memory_space<vmem>>, vector<8x1xf32>,
      %cst_9 = arith.constant 0.000000e+00 : f32
      %16 = vector.broadcast %cst_9 : f32 to vector<8x8xf32>
      %c0_10 = arith.constant 0 : index
      %c0_11 = arith.constant 0 : index
      %17 = vector.load %arg10[%c0_10, %c0_11] : memref<8x8xf32, #tpu.memory_space<vmem>>, vector<8x8xf32>
      tpu.vector_store %arg10[%c0_10, %c0_11], %16 {strides = array<i32>} : memref<8x8xf32, #tpu.memory_space<vmem>>, vector<8x8xf32>,
    } else {
    }
    %c8_i32 = arith.constant 8 : i32
    %3 = arith.muli %arg3, %c8_i32 : i32
    %c8_i32_1 = arith.constant 8 : i32
    %4 = arith.muli %arg2, %c8_i32_1 : i32
    %c7_i32 = arith.constant 7 : i32
    %5 = arith.addi %4, %c7_i32 : i32
    %6 = arith.cmpi sle, %3, %5 : i32
    %7 = arith.extui %6 : i1 to i32
    %c0_i32_2 = arith.constant 0 : i32
    %8 = arith.cmpi ne, %7, %c0_i32_2 : i32
    scf.if %8 {
      %c0 = arith.constant 0 : index
      %c0_5 = arith.constant 0 : index
      %c0_6 = arith.constant 0 : index
      %c0_7 = arith.constant 0 : index
      %12 = vector.load %arg4[%c0, %c0_5, %c0_6, %c0_7] : memref<1x1x8x8xf32, #tpu.memory_space<vmem>>, vector<1x1x8x8xf32>
      %13 = vector.shape_cast %12 : vector<1x1x8x8xf32> to vector<8x8xf32>
      %c0_8 = arith.constant 0 : index
      %c0_9 = arith.constant 0 : index
      %c0_10 = arith.constant 0 : index
      %c0_11 = arith.constant 0 : index
      %14 = vector.load %arg5[%c0_8, %c0_9, %c0_10, %c0_11] : memref<1x1x8x8xf32, #tpu.memory_space<vmem>>, vector<1x1x8x8xf32>
      %15 = vector.shape_cast %14 : vector<1x1x8x8xf32> to vector<8x8xf32>
      %c0_12 = arith.constant 0 : index
      %c0_13 = arith.constant 0 : index
      %c0_14 = arith.constant 0 : index
      %c0_15 = arith.constant 0 : index
      %16 = vector.load %arg6[%c0_12, %c0_13, %c0_14, %c0_15] : memref<1x1x8x8xf32, #tpu.memory_space<vmem>>, vector<1x1x8x8xf32>
      %17 = vector.shape_cast %16 : vector<1x1x8x8xf32> to vector<8x8xf32>
      %cst = arith.constant dense<0.000000e+00> : vector<8x8xf32>
      %18 = tpu.matmul %13, %15, %cst {dimension_numbers = #tpu.dot_dimension_numbers<[1], [1], [0], [0], [0, 0, 1, 0], [], []>} : vector<8x8xf32>, vector<8x8xf32>, vector<8x8xf32> -> vector<8x8xf32>
      %cst_16 = arith.constant 0.353553385 : f32
      %19 = vector.broadcast %cst_16 : f32 to vector<8x8xf32>
      %20 = arith.mulf %18, %19 : vector<8x8xf32>
      %c8_i32_17 = arith.constant 8 : i32
      %21 = arith.muli %arg2, %c8_i32_17 : i32
      %22 = tpu.iota {dimensions = array<i32: 0>} : vector<8x8xi32>
      %23 = vector.broadcast %21 : i32 to vector<8x8xi32>
      %24 = arith.addi %23, %22 : vector<8x8xi32>
      %c8_i32_18 = arith.constant 8 : i32
      %25 = arith.muli %arg3, %c8_i32_18 : i32
      %26 = tpu.iota {dimensions = array<i32: 1>} : vector<8x8xi32>
      %27 = vector.broadcast %25 : i32 to vector<8x8xi32>
      %28 = arith.addi %27, %26 : vector<8x8xi32>
      %29 = arith.cmpi sgt, %28, %24 : vector<8x8xi32>
      %cst_19 = arith.constant -3.40282347E+38 : f32
      %30 = vector.broadcast %cst_19 : f32 to vector<8x8xf32>
      %31 = arith.select %29, %30, %20 : vector<8x8xi1>, vector<8x8xf32>
      %c0_20 = arith.constant 0 : index
      %c0_21 = arith.constant 0 : index
      %32 = vector.load %arg8[%c0_20, %c0_21] : memref<8x1xf32, #tpu.memory_space<vmem>>, vector<8x1xf32>
      %cst_22 = arith.constant dense<0xFF800000> : vector<8xf32>
      %33 = vector.multi_reduction <maximumf>, %31, %cst_22 [1] : vector<8x8xf32> to vector<8xf32>
      %34 = vector.shape_cast %33 : vector<8xf32> to vector<8x1xf32>
      %35 = arith.maximumf %32, %34 : vector<8x1xf32>
      %36 = arith.subf %32, %35 : vector<8x1xf32>
      %37 = math.exp %36 : vector<8x1xf32>
      %38 = vector.broadcast %35 : vector<8x1xf32> to vector<8x8xf32>
      %39 = arith.subf %31, %38 : vector<8x8xf32>
      %40 = math.exp %39 : vector<8x8xf32>
      %c0_23 = arith.constant 0 : index
      %c0_24 = arith.constant 0 : index
      %41 = vector.load %arg9[%c0_23, %c0_24] : memref<8x1xf32, #tpu.memory_space<vmem>>, vector<8x1xf32>
      %42 = arith.mulf %37, %41 : vector<8x1xf32>
      %cst_25 = arith.constant dense<0.000000e+00> : vector<8xf32>
      %43 = vector.multi_reduction <add>, %40, %cst_25 [1] : vector<8x8xf32> to vector<8xf32>
      %44 = vector.shape_cast %43 : vector<8xf32> to vector<8x1xf32>
      %45 = arith.addf %42, %44 : vector<8x1xf32>
      %c0_26 = arith.constant 0 : index
      %c0_27 = arith.constant 0 : index
      %46 = vector.load %arg9[%c0_26, %c0_27] : memref<8x1xf32, #tpu.memory_space<vmem>>, vector<8x1xf32>
      tpu.vector_store %arg9[%c0_26, %c0_27], %45 {strides = array<i32>} : memref<8x1xf32, #tpu.memory_space<vmem>>, vector<8x1xf32>,
      %c0_28 = arith.constant 0 : index
      %c0_29 = arith.constant 0 : index
      %47 = vector.load %arg10[%c0_28, %c0_29] : memref<8x8xf32, #tpu.memory_space<vmem>>, vector<8x8xf32>
      %48 = vector.broadcast %37 : vector<8x1xf32> to vector<8x8xf32>
      %49 = arith.mulf %48, %47 : vector<8x8xf32>
      %cst_30 = arith.constant dense<0.000000e+00> : vector<8x8xf32>
      %50 = tpu.matmul %40, %17, %cst_30 {dimension_numbers = #tpu.dot_dimension_numbers<[1], [0], [0], [1], [0, 0, 1, 1], [], []>} : vector<8x8xf32>, vector<8x8xf32>, vector<8x8xf32> -> vector<8x8xf32>
      %51 = arith.addf %49, %50 : vector<8x8xf32>
      %c0_31 = arith.constant 0 : index
      %c0_32 = arith.constant 0 : index
      %52 = vector.load %arg10[%c0_31, %c0_32] : memref<8x8xf32, #tpu.memory_space<vmem>>, vector<8x8xf32>
      tpu.vector_store %arg10[%c0_31, %c0_32], %51 {strides = array<i32>} : memref<8x8xf32, #tpu.memory_space<vmem>>, vector<8x8xf32>,
      %c0_33 = arith.constant 0 : index
      %c0_34 = arith.constant 0 : index
      %53 = vector.load %arg8[%c0_33, %c0_34] : memref<8x1xf32, #tpu.memory_space<vmem>>, vector<8x1xf32>
      tpu.vector_store %arg8[%c0_33, %c0_34], %35 {strides = array<i32>} : memref<8x1xf32, #tpu.memory_space<vmem>>, vector<8x1xf32>,
    } else {
    }
    %c0_i32_3 = arith.constant 0 : i32
    %9 = arith.cmpi eq, %arg3, %c0_i32_3 : i32
    %10 = arith.extui %9 : i1 to i32
    %c0_i32_4 = arith.constant 0 : i32
    %11 = arith.cmpi ne, %10, %c0_i32_4 : i32
    scf.if %11 {
      %c0 = arith.constant 0 : index
      %c0_5 = arith.constant 0 : index
      %12 = vector.load %arg10[%c0, %c0_5] : memref<8x8xf32, #tpu.memory_space<vmem>>, vector<8x8xf32>
      %c0_6 = arith.constant 0 : index
      %c0_7 = arith.constant 0 : index
      %13 = vector.load %arg9[%c0_6, %c0_7] : memref<8x1xf32, #tpu.memory_space<vmem>>, vector<8x1xf32>
      %14 = tpu.reciprocal %13 : vector<8x1xf32> -> vector<8x1xf32>
      %15 = vector.broadcast %14 : vector<8x1xf32> to vector<8x8xf32>
      %16 = arith.mulf %12, %15 : vector<8x8xf32>
      %c0_8 = arith.constant 0 : index
      %c0_9 = arith.constant 0 : index
      %c0_10 = arith.constant 0 : index
      %c0_11 = arith.constant 0 : index
      %17 = vector.load %arg7[%c0_8, %c0_9, %c0_10, %c0_11] : memref<1x1x8x8xf32, #tpu.memory_space<vmem>>, vector<1x1x8x8xf32>
      %18 = vector.shape_cast %17 : vector<1x1x8x8xf32> to vector<8x8xf32>
      %19 = vector.shape_cast %16 : vector<8x8xf32> to vector<1x1x8x8xf32>
      tpu.vector_store %arg7[%c0_8, %c0_9, %c0_10, %c0_11], %19 {strides = array<i32>} : memref<1x1x8x8xf32, #tpu.memory_space<vmem>>, vector<1x1x8x8xf32>,
    } else {
    }
    return
  }
  func.func @transform_0(%arg0: i32, %arg1: i32, %arg2: i32, %arg3: i32) -> (i32, i32, i32, i32) {
    %c0_i32 = arith.constant 0 : i32
    %c0_i32_0 = arith.constant 0 : i32
    return %arg0, %arg1, %arg2, %c0_i32 : i32, i32, i32, i32
  }
  func.func @transform_1(%arg0: i32, %arg1: i32, %arg2: i32, %arg3: i32) -> (i32, i32, i32, i32) {
    %c4_i32 = arith.constant 4 : i32
    %0 = arith.addi %c4_i32, %arg1 : i32
    %c0_i32 = arith.constant 0 : i32
    %c0_i32_0 = arith.constant 0 : i32
    return %arg0, %0, %arg3, %c0_i32 : i32, i32, i32, i32
  }
  func.func @transform_2(%arg0: i32, %arg1: i32, %arg2: i32, %arg3: i32) -> (i32, i32, i32, i32) {
    %c8_i32 = arith.constant 8 : i32
    %0 = arith.addi %c8_i32, %arg1 : i32
    %c0_i32 = arith.constant 0 : i32
    %c0_i32_0 = arith.constant 0 : i32
    return %arg0, %0, %arg3, %c0_i32 : i32, i32, i32, i32
  }
  func.func @transform_3(%arg0: i32, %arg1: i32, %arg2: i32, %arg3: i32) -> (i32, i32, i32, i32) {
    %c0_i32 = arith.constant 0 : i32
    %c0_i32_0 = arith.constant 0 : i32
    return %arg0, %arg1, %arg2, %c0_i32 : i32, i32, i32, i32
  }
}

module attributes {stable_mosaic.version = 11 : i64} {
  func.func @_out_proj_kernel(%arg0: i32, %arg1: i32, %arg2: i32, %arg3: i32, %arg4: memref<1x1x8x8xf32, #tpu.memory_space<vmem>>, %arg5: memref<1x8x32xf32, #tpu.memory_space<vmem>>, %arg6: memref<1x8x32xf32, #tpu.memory_space<vmem>>, %arg7: memref<8x32xf32, #tpu.memory_space<vmem>>) attributes {dimension_semantics = [#tpu.dimension_semantics<parallel>, #tpu.dimension_semantics<parallel>, #tpu.dimension_semantics<parallel>, #tpu.dimension_semantics<arbitrary>], iteration_bounds = array<i64: 2, 1, 1, 4>, scalar_prefetch = 0 : i64, scratch_operands = 1 : i64, tpu.core_type = #tpu.core_type<tc>, window_params = [{transform_indices = @transform_0, window_bounds = array<i64: 1, 1, 8, 8>}, {transform_indices = @transform_1, window_bounds = array<i64: 1, 8, 32>}, {transform_indices = @transform_2, window_bounds = array<i64: 1, 8, 32>}]} {
    %c0_i32 = arith.constant 0 : i32
    %0 = arith.cmpi eq, %arg3, %c0_i32 : i32
    %1 = arith.extui %0 : i1 to i32
    %c0_i32_0 = arith.constant 0 : i32
    %2 = arith.cmpi ne, %1, %c0_i32_0 : i32
    scf.if %2 {
      %cst_12 = arith.constant 0.000000e+00 : f32
      %14 = vector.broadcast %cst_12 : f32 to vector<8x32xf32>
      %c0_13 = arith.constant 0 : index
      %c0_14 = arith.constant 0 : index
      %15 = vector.load %arg7[%c0_13, %c0_14] : memref<8x32xf32, #tpu.memory_space<vmem>>, vector<8x32xf32>
      tpu.vector_store %arg7[%c0_13, %c0_14], %14 {strides = array<i32>} : memref<8x32xf32, #tpu.memory_space<vmem>>, vector<8x32xf32>,
    } else {
    }
    %c0 = arith.constant 0 : index
    %c0_1 = arith.constant 0 : index
    %3 = vector.load %arg7[%c0, %c0_1] : memref<8x32xf32, #tpu.memory_space<vmem>>, vector<8x32xf32>
    %c0_2 = arith.constant 0 : index
    %c0_3 = arith.constant 0 : index
    %c0_4 = arith.constant 0 : index
    %c0_5 = arith.constant 0 : index
    %4 = vector.load %arg4[%c0_2, %c0_3, %c0_4, %c0_5] : memref<1x1x8x8xf32, #tpu.memory_space<vmem>>, vector<1x1x8x8xf32>
    %5 = vector.shape_cast %4 : vector<1x1x8x8xf32> to vector<8x8xf32>
    %c0_6 = arith.constant 0 : index
    %c0_7 = arith.constant 0 : index
    %c0_8 = arith.constant 0 : index
    %6 = vector.load %arg5[%c0_6, %c0_7, %c0_8] : memref<1x8x32xf32, #tpu.memory_space<vmem>>, vector<1x8x32xf32>
    %7 = vector.shape_cast %6 : vector<1x8x32xf32> to vector<8x32xf32>
    %cst = arith.constant dense<0.000000e+00> : vector<8x32xf32>
    %8 = tpu.matmul %5, %7, %cst {dimension_numbers = #tpu.dot_dimension_numbers<[1], [0], [0], [1], [0, 0, 1, 1], [], []>} : vector<8x8xf32>, vector<8x32xf32>, vector<8x32xf32> -> vector<8x32xf32>
    %9 = arith.addf %3, %8 : vector<8x32xf32>
    %c0_9 = arith.constant 0 : index
    %c0_10 = arith.constant 0 : index
    %10 = vector.load %arg7[%c0_9, %c0_10] : memref<8x32xf32, #tpu.memory_space<vmem>>, vector<8x32xf32>
    tpu.vector_store %arg7[%c0_9, %c0_10], %9 {strides = array<i32>} : memref<8x32xf32, #tpu.memory_space<vmem>>, vector<8x32xf32>,
    %c3_i32 = arith.constant 3 : i32
    %11 = arith.cmpi eq, %arg3, %c3_i32 : i32
    %12 = arith.extui %11 : i1 to i32
    %c0_i32_11 = arith.constant 0 : i32
    %13 = arith.cmpi ne, %12, %c0_i32_11 : i32
    scf.if %13 {
      %c0_12 = arith.constant 0 : index
      %c0_13 = arith.constant 0 : index
      %14 = vector.load %arg7[%c0_12, %c0_13] : memref<8x32xf32, #tpu.memory_space<vmem>>, vector<8x32xf32>
      %c0_14 = arith.constant 0 : index
      %c0_15 = arith.constant 0 : index
      %c0_16 = arith.constant 0 : index
      %15 = vector.load %arg6[%c0_14, %c0_15, %c0_16] : memref<1x8x32xf32, #tpu.memory_space<vmem>>, vector<1x8x32xf32>
      %16 = vector.shape_cast %15 : vector<1x8x32xf32> to vector<8x32xf32>
      %17 = vector.shape_cast %14 : vector<8x32xf32> to vector<1x8x32xf32>
      tpu.vector_store %arg6[%c0_14, %c0_15, %c0_16], %17 {strides = array<i32>} : memref<1x8x32xf32, #tpu.memory_space<vmem>>, vector<1x8x32xf32>,
    } else {
    }
    return
  }
  func.func @transform_0(%arg0: i32, %arg1: i32, %arg2: i32, %arg3: i32) -> (i32, i32, i32, i32) {
    %c0_i32 = arith.constant 0 : i32
    %c0_i32_0 = arith.constant 0 : i32
    return %arg0, %arg3, %arg1, %c0_i32 : i32, i32, i32, i32
  }
  func.func @transform_1(%arg0: i32, %arg1: i32, %arg2: i32, %arg3: i32) -> (i32, i32, i32) {
    %c0_i32 = arith.constant 0 : i32
    %c0_i32_0 = arith.constant 0 : i32
    return %arg3, %c0_i32, %arg2 : i32, i32, i32
  }
  func.func @transform_2(%arg0: i32, %arg1: i32, %arg2: i32, %arg3: i32) -> (i32, i32, i32) {
    %c0_i32 = arith.constant 0 : i32
    return %arg0, %arg1, %arg2 : i32, i32, i32
  }
}

</mosaic_0001>

<llo_original>
// kernel: multi_head_attention.5
$region0: #{multi_head_attention.5}
  #allocation0 [shape = 'u32[]', space=smem, size = 0x4, offset = 0x4, fixed_abs, tag = 'smem constant byte address 0x4 - core index']
  #allocation1 [shape = 'u32[144,128]{1,0:T(1,128)}', space=vmem, size = 0x12000, scoped, tag = 'internal scratch']
  #allocation2 [shape = 'f32[8,32]{1,0:T(8,128)}', space=vmem, size = 0x1000, scoped, tag = 'scratch operand']
  %s0 = inlined_call_operand.vmem [shape: f32[2,4,8,8], index: 0, kind: input, shape index: {}]
  %s1 = inlined_call_operand.vmem [shape: f32[4,8,32], index: 1, kind: input, shape index: {}]
  %s2 = inlined_call_operand.hbm [shape: f32[2,8,32], index: 2, kind: output, shape index: {}]
  %s3 = sld [smem:[#allocation0]]
  $region49: #{multi_head_attention.5} parent=0
    _
  %s5 = ssub.s32 1, %s3
  %s6 = scalar_select 0, %s5, %s3
  $region1: #{multi_head_attention.5} parent=0
    #allocation3 [shape = 'u8[8192]{0}', space=vmem, size = 0x2000, scoped, tag = 'output window, operand 0']
    #allocation4 [shape = 's32[2]{0}', space=sflag, size = 0x8, scoped, tag = 'scoped memory for multi_head_attention.5']
    %7 = vsyncpa [#allocation4], 0
    %s8 = scalar_lea.sflag [#allocation4], 1
    %9 = vsyncpa %s8, 0
    loop: start=0, step=1, limit=10
    $region2: #{multi_head_attention.5} parent=1 // loop_pre_header
      _
    $region3: #{multi_head_attention.5} parent=1 // loop_header
      %s11 = sphi 0, %s15
      %p12 = scmp.ge.s32.totalorder %s11, 10
      %s18 = sphi 0, %s44
      %s19 = sphi 0, %s40
      %s20 = sphi 0, %s36
      %s21 = sphi 0, %s32
      %s22 = sphi 0, %s18
      %s23 = sphi 0, %s19
      %s24 = sphi 0, %s20
      %s25 = sphi 0, %s21
      %s26 = sphi 0, %s22
      %s27 = sphi 0, %s23
      %s28 = sphi 0, %s24
      %s29 = sphi 0, %s25
      %s51 = sphi 0, %s53
      %s54 = sphi 0, %s51
      %s55 = sphi 0, %s54
      %s71 = sphi 0, %s55
      %s79 = sphi 0, %s81
      %s82 = sphi 0, %s79
      %s83 = sphi 0, %s82
      %s99 = sphi 0, %s83
      %s109 = sphi 0, %s111
      %s112 = sphi 0, %s109
      %s113 = sphi 0, %s112
      %s129 = sphi 0, %s113
    $region4: #{multi_head_attention.5} parent=1 // loop_header_branch
      %14 = sbr.rel (%p12) target = $region8
    $region5: #{multi_head_attention.5} parent=1 // loop_body
      %s16 = ssub.s32 %s11, 1
      %s17 = ssub.s32 %s11, 2
      %s30 = sadd.s32 1, %s21
      %p31 = scmp.ge.s32.totalorder %s30, 4
      %s32 = scalar_select %p31, 0, %s30
      %s33 = sadd.s32 1, %s20
      %s34 = scalar_select %p31, %s33, %s20
      %p35 = scmp.ge.s32.totalorder %s34, 1
      %s36 = scalar_select %p35, 0, %s34
      %s37 = sadd.s32 1, %s19
      %s38 = scalar_select %p35, %s37, %s19
      %p39 = scmp.ge.s32.totalorder %s38, 1
      %s40 = scalar_select %p39, 0, %s38
      %s41 = sadd.s32 1, %s18
      %s42 = scalar_select %p39, %s41, %s18
      %p43 = scmp.ge.s32.totalorder %s42, 2
      %s44 = scalar_select %p43, 0, %s42
      %s45 = ssub.s32 %s18, %s44
      %s46 = ssub.s32 %s21, %s32
      %s47 = sor.u32 %s45, %s46
      %s48 = ssub.s32 %s19, %s40
      %s49 = sor.u32 %s47, %s48
      %p50 = scmp.eq.s32.totalorder %s49, 0
      %s52 = sadd.s32 %s51, 1
      %s53 = scalar_select %p50, %s51, %s52
      %p56 = pneg %p50
      %p57 = scmp.eq.s32.totalorder %s11, 7
      %p58 = por %p56, %p57
      %p59 = scmp.ne.s32.totalorder %s51, %s54
      %p60 = scmp.eq.s32.totalorder %s11, 0
      %p61 = por %p59, %p60
      %p62 = scmp.ne.s32.totalorder %s51, %s54
      %p63 = scmp.eq.s32.totalorder %s16, 7
      %p64 = por %p62, %p63
      %p65 = scmp.ne.s32.totalorder %s54, %s55
      %p66 = scmp.eq.s32.totalorder %s16, 0
      %p67 = por %p65, %p66
      %p68 = scmp.ne.s32.totalorder %s54, %s55
      %p69 = scmp.eq.s32.totalorder %s17, 7
      %p70 = por %p68, %p69
      %p72 = scmp.ne.s32.totalorder %s55, %s71
      %p73 = scmp.eq.s32.totalorder %s17, 0
      %p74 = por %p72, %p73
      %s75 = ssub.s32 %s21, %s32
      %s76 = ssub.s32 %s20, %s36
      %s77 = sor.u32 %s75, %s76
      %p78 = scmp.eq.s32.totalorder %s77, 0
      %s80 = sadd.s32 %s79, 1
      %s81 = scalar_select %p78, %s79, %s80
      %p84 = pneg %p78
      %p85 = scmp.eq.s32.totalorder %s11, 7
      %p86 = por %p84, %p85
      %p87 = scmp.ne.s32.totalorder %s79, %s82
      %p88 = scmp.eq.s32.totalorder %s11, 0
      %p89 = por %p87, %p88
      %p90 = scmp.ne.s32.totalorder %s79, %s82
      %p91 = scmp.eq.s32.totalorder %s16, 7
      %p92 = por %p90, %p91
      %p93 = scmp.ne.s32.totalorder %s82, %s83
      %p94 = scmp.eq.s32.totalorder %s16, 0
      %p95 = por %p93, %p94
      %p96 = scmp.ne.s32.totalorder %s82, %s83
      %p97 = scmp.eq.s32.totalorder %s17, 7
      %p98 = por %p96, %p97
      %p100 = scmp.ne.s32.totalorder %s83, %s99
      %p101 = scmp.eq.s32.totalorder %s17, 0
      %p102 = por %p100, %p101
      %s103 = ssub.s32 %s18, %s44
      %s104 = ssub.s32 %s19, %s40
      %s105 = sor.u32 %s103, %s104
      %s106 = ssub.s32 %s20, %s36
      %s107 = sor.u32 %s105, %s106
      %p108 = scmp.eq.s32.totalorder %s107, 0
      %s110 = sadd.s32 %s109, 1
      %s111 = scalar_select %p108, %s109, %s110
      %p114 = pneg %p108
      %p115 = scmp.eq.s32.totalorder %s11, 7
      %p116 = por %p114, %p115
      %p117 = scmp.ne.s32.totalorder %s109, %s112
      %p118 = scmp.eq.s32.totalorder %s11, 0
      %p119 = por %p117, %p118
      %p120 = scmp.ne.s32.totalorder %s109, %s112
      %p121 = scmp.eq.s32.totalorder %s16, 7
      %p122 = por %p120, %p121
      %p123 = scmp.ne.s32.totalorder %s112, %s113
      %p124 = scmp.eq.s32.totalorder %s16, 0
      %p125 = por %p123, %p124
      %p126 = scmp.ne.s32.totalorder %s112, %s113
      %p127 = scmp.eq.s32.totalorder %s17, 7
      %p128 = por %p126, %p127
      %p130 = scmp.ne.s32.totalorder %s113, %s129
      %p131 = scmp.eq.s32.totalorder %s17, 0
      %p132 = por %p130, %p131
      %p133 = scmp.le.s32.totalorder 1, %s11
      %p134 = scmp.lt.s32.totalorder %s11, 9
      %p135 = pnand %p133, %p134
      %p136 = pneg %p135
      // Predicated region
      $region9: #{multi_head_attention.5} parent=5 // pred_check
        _
      $region10: #{multi_head_attention.5} parent=5 // pred_check_branch
        %138 = sbr.rel (%p135) target = $region12
      $region11: #{multi_head_attention.5} parent=5 // pred_region
        %s139 = ssub.s32 %s11, 1
      $region12: #{multi_head_attention.5} parent=5 // pred_fallthru
        _
      %p140 = scmp.lt.s32.totalorder %s11, 8
      // Predicated region
      $region13: #{multi_head_attention.5} parent=5 // pred_check
        %p141 = pneg %p140
      $region14: #{multi_head_attention.5} parent=5 // pred_check_branch
        %143 = sbr.rel (%p141) target = $region16
      $region15: #{multi_head_attention.5} parent=5 // pred_region
        // Predicated region
        $region17: #{multi_head_attention.5} parent=15 // pred_check
          %p144 = pneg %p61
        $region18: #{multi_head_attention.5} parent=15 // pred_check_branch
          %146 = sbr.rel (%p144) target = $region20
        $region19: #{multi_head_attention.5} parent=15 // pred_region
          %p147 = scmp.lt.s32.totalorder %s18, 1
          %s148 = scalar_select %p147, %s18, 1
          %p149 = scmp.lt.s32.totalorder %s21, 3
          %s150 = scalar_select %p149, %s21, 3
          %p151 = scmp.lt.s32.totalorder %s19, 0
          %s152 = scalar_select %p151, %s19, 0
          %s153 = sadd.s32 %s152, %s150
          %s154 = smul.addr %s148, 4
          %s155 = sadd.s32 %s153, %s154
          %s156 = smul.addr %s155, 8
          %s157 = scalar_lea.vmem %s0, %s156
        $region20: #{multi_head_attention.5} parent=15 // pred_fallthru
          _
        // Predicated region
        $region21: #{multi_head_attention.5} parent=15 // pred_check
          %p158 = pneg %p89
        $region22: #{multi_head_attention.5} parent=15 // pred_check_branch
          %160 = sbr.rel (%p158) target = $region24
        $region23: #{multi_head_attention.5} parent=15 // pred_region
          %p161 = scmp.lt.s32.totalorder %s21, 3
          %s162 = scalar_select %p161, %s21, 3
          %p163 = scmp.lt.s32.totalorder %s20, 0
          %s164 = scalar_select %p163, %s20, 0
          %s165 = sadd.s32 %s164, %s162
          %s166 = smul.addr %s165, 8
          %s167 = scalar_lea.vmem %s1, %s166
        $region24: #{multi_head_attention.5} parent=15 // pred_fallthru
          _
      $region16: #{multi_head_attention.5} parent=5 // pred_fallthru
        _
      %p168 = scmp.le.s32.totalorder 1, %s11
      %p169 = scmp.lt.s32.totalorder %s11, 9
      %p170 = pnand %p168, %p169
      %p171 = pneg %p170
      // Predicated region
      $region25: #{multi_head_attention.5} parent=5 // pred_check
        _
      $region26: #{multi_head_attention.5} parent=5 // pred_check_branch
        %173 = sbr.rel (%p170) target = $region28
      $region27: #{multi_head_attention.5} parent=5 // pred_region
        %s174 = ssub.s32 %s11, 1
        %p175 = scmp.lt.s32.totalorder %s22, 1
        %s176 = scalar_select %p175, %s22, 1
        %p177 = scmp.lt.s32.totalorder %s25, 3
        %s178 = scalar_select %p177, %s25, 3
        %p179 = scmp.lt.s32.totalorder %s23, 0
        %s180 = scalar_select %p179, %s23, 0
        %s181 = sadd.s32 %s180, %s178
        %s182 = smul.addr %s176, 4
        %s183 = sadd.s32 %s181, %s182
        %s184 = smul.addr %s183, 8
        %s185 = scalar_lea.vmem %s0, %s184
        %p186 = pneg %p67
        %p187 = pneg %p64
        %p188 = scmp.lt.s32.totalorder %s25, 3
        %s189 = scalar_select %p188, %s25, 3
        %p190 = scmp.lt.s32.totalorder %s24, 0
        %s191 = scalar_select %p190, %s24, 0
        %s192 = sadd.s32 %s191, %s189
        %s193 = smul.addr %s192, 8
        %s194 = scalar_lea.vmem %s1, %s193
        %p195 = pneg %p95
        %p196 = pneg %p92
        %p197 = pneg %p125
        %p198 = pneg %p122
        %s199 = sand.u32 %s112, 1
        %s200 = scalar_lea.sflag [#allocation4], %s199
        %s201 = sand.u32 %s112, 1
        %s202 = smul.addr %s201, 8
        %s203 = scalar_lea.vmem [#allocation3], %s202
        %p204 = scmp.lt.s32.totalorder %s22, 1
        %s205 = scalar_select %p204, %s22, 1
        %p206 = scmp.lt.s32.totalorder %s25, 3
        %s207 = scalar_select %p206, %s25, 3
        %p208 = scmp.lt.s32.totalorder %s23, 0
        %s209 = scalar_select %p208, %s23, 0
        %s210 = sadd.s32 %s209, %s207
        %s211 = smul.addr %s205, 4
        %s212 = sadd.s32 %s210, %s211
        %s213 = smul.addr %s212, 8
        %s214 = scalar_lea.vmem %s0, %s213
        %p215 = scmp.lt.s32.totalorder %s25, 3
        %s216 = scalar_select %p215, %s25, 3
        %p217 = scmp.lt.s32.totalorder %s24, 0
        %s218 = scalar_select %p217, %s24, 0
        %s219 = sadd.s32 %s218, %s216
        %s220 = smul.addr %s219, 8
        %s221 = scalar_lea.vmem %s1, %s220
        %p222 = scmp.eq.s32.totalorder %s25, 0
        // Predicated region
        $region29: #{multi_head_attention.5} parent=27 // pred_check
          %p223 = pneg %p222
        $region30: #{multi_head_attention.5} parent=27 // pred_check_branch
          %225 = sbr.rel (%p223) target = $region32
        $region31: #{multi_head_attention.5} parent=27 // pred_region
          %vm226 = vcmask 261120
          %227 = vst.msk [vmem:[#allocation2] sm:$0xff] %vm226, 0.0
        $region32: #{multi_head_attention.5} parent=27 // pred_fallthru
          _
        %v228 = vld [vmem:[#allocation2] sm:$0xff]
        %v229 = vld [vmem:[%s214] sm:$0xff]
        %v230 = vld [vmem:[%s221] sm:$0xff]
        %vm231 = vcmask 64512
        %v233 = vsel %vm231, %v229, 0
        %235 = vmatprep.subr.mxu0 0.0
        %236 = vmatpush1.msra.mxu0 %v230
        %237 = vmatprep.subr.mxu0 0.0
        %238 = vmatpush1.msra.mxu0 0.0
        %239 = vmatprep.subr.mxu0 0.0
        %240 = vmatpush1.msra.mxu0 0.0
        %241 = vmatprep.subr.mxu0 0.0
        %242 = vmatpush1.msra.mxu0 0.0
        %243 = vmatprep.subr.mxu0 0.0
        %244 = vmatpush1.msra.mxu0 0.0
        %245 = vmatprep.subr.mxu0 0.0
        %246 = vmatpush1.msra.mxu0 0.0
        %247 = vmatprep.subr.mxu0 0.0
        %248 = vmatpush1.msra.mxu0 0.0
        %249 = vmatprep.subr.mxu0 0.0
        %250 = vmatpush1.msra.mxu0 0.0
        %251 = vmatprep.subr.mxu0 0.0
        %252 = vmatpush1.msra.mxu0 0.0
        %253 = vmatprep.subr.mxu0 0.0
        %254 = vmatpush1.msra.mxu0 0.0
        %255 = vmatprep.subr.mxu0 0.0
        %256 = vmatpush1.msra.mxu0 0.0
        %257 = vmatprep.subr.mxu0 0.0
        %258 = vmatpush1.msra.mxu0 0.0
        %259 = vmatprep.subr.mxu0 0.0
        %260 = vmatpush1.msra.mxu0 0.0
        %261 = vmatprep.subr.mxu0 0.0
        %262 = vmatpush1.msra.mxu0 0.0
        %263 = vmatprep.subr.mxu0 0.0
        %264 = vmatpush1.msra.mxu0 0.0
        %265 = vmatprep.subr.mxu0 0.0
        %266 = vmatpush1.msra.mxu0 0.0
        %267 = vmatprep.subr.mxu0 0.0
        %268 = vmatpush1.msra.mxu0 0.0
        %269 = vmatprep.subr.mxu0 0.0
        %270 = vmatpush1.msra.mxu0 0.0
        %271 = vmatprep.subr.mxu0 0.0
        %272 = vmatpush1.msra.mxu0 0.0
        %273 = vmatprep.subr.mxu0 0.0
        %274 = vmatpush1.msra.mxu0 0.0
        %275 = vmatprep.subr.mxu0 0.0
        %276 = vmatpush1.msra.mxu0 0.0
        %277 = vmatprep.subr.mxu0 0.0
        %278 = vmatpush1.msra.mxu0 0.0
        %279 = vmatprep.subr.mxu0 0.0
        %280 = vmatpush1.msra.mxu0 0.0
        %281 = vmatprep.subr.mxu0 0.0
        %282 = vmatpush1.msra.mxu0 0.0
        %283 = vmatprep.subr.mxu0 0.0
        %284 = vmatpush1.msra.mxu0 0.0
        %285 = vmatprep.subr.mxu0 0.0
        %286 = vmatpush1.msra.mxu0 0.0
        %287 = vmatprep.subr.mxu0 0.0
        %288 = vmatpush1.msra.mxu0 0.0
        %289 = vmatprep.subr.mxu0 0.0
        %290 = vmatpush1.msra.mxu0 0.0
        %291 = vmatprep.subr.mxu0 0.0
        %292 = vmatpush1.msra.mxu0 0.0
        %293 = vmatprep.subr.mxu0 0.0
        %294 = vmatpush1.msra.mxu0 0.0
        %295 = vmatprep.subr.mxu0 0.0
        %296 = vmatpush1.msra.mxu0 0.0
        %297 = vmatprep.subr.mxu0 0.0
        %298 = vmatpush1.msra.mxu0 0.0
        %299 = vmatprep.mubr.f32.mxu0 0.0
        %300 = vmatmul.mubr.f32.gmra.mrb[0].mxu0 %v233
        %v301 = vpop.f32.mrb[0].mxu0
        %v302 = vadd.f32 0.0, %v301
        %v303 = vpop.f32.mrb[0].mxu0
        %304 = vdwg.mxu0
        %v305 = vadd.f32 %v228, %v302
        %vm306 = vcmask 261120
        %307 = vst.msk [vmem:[#allocation2] sm:$0xff] %vm306, %v305
        %p308 = scmp.eq.s32.totalorder %s25, 3
        // Predicated region
        $region33: #{multi_head_attention.5} parent=27 // pred_check
          %p309 = pneg %p308
        $region34: #{multi_head_attention.5} parent=27 // pred_check_branch
          %311 = sbr.rel (%p309) target = $region36
        $region35: #{multi_head_attention.5} parent=27 // pred_region
          %v312 = vld [vmem:[#allocation2] sm:$0xff]
          %313 = vst.msk [vmem:[%s203] sm:$0xff] %vm306, %v312
        $region36: #{multi_head_attention.5} parent=27 // pred_fallthru
          _
        %s314 = sand.u32 %s112, 1
        %s315 = scalar_lea.sflag [#allocation4], %s314
        %s316 = sand.u32 %s112, 1
        %s317 = smul.addr %s316, 8
        %s318 = scalar_lea.vmem [#allocation3], %s317
        // Predicated region
        $region37: #{multi_head_attention.5} parent=27 // pred_check
          %p319 = pneg %p122
        $region38: #{multi_head_attention.5} parent=27 // pred_check_branch
          %321 = sbr.rel (%p319) target = $region40
        $region39: #{multi_head_attention.5} parent=27 // pred_region
          %s323 = ssub.s32 128, 128
          %324 = vsyncadd %s315, %s323
          %s325 = sadd.s32 %s24, %s23
          %s326 = sadd.s32 %s325, %s22
          %s327 = smul.addr %s326, 128
          %s328 = scalar_lea.hbm %s2, %s327
          %s330 = sshll.u32 %s318, 4
          %s331 = int_to_ptr.vmem [resolvable:$true] %s330
          %333 = dma.vmem_to_hbm [thread:$0]  %s331, 128, %s328, %s315
        $region40: #{multi_head_attention.5} parent=27 // pred_fallthru
          _
      $region28: #{multi_head_attention.5} parent=5 // pred_fallthru
        _
      %p334 = scmp.le.s32.totalorder 2, %s11
      // Predicated region
      $region41: #{multi_head_attention.5} parent=5 // pred_check
        %p335 = pneg %p334
      $region42: #{multi_head_attention.5} parent=5 // pred_check_branch
        %337 = sbr.rel (%p335) target = $region44
      $region43: #{multi_head_attention.5} parent=5 // pred_region
        %s338 = ssub.s32 %s11, 2
        // Predicated region
        $region45: #{multi_head_attention.5} parent=43 // pred_check
          %p339 = pneg %p128
        $region46: #{multi_head_attention.5} parent=43 // pred_check_branch
          %341 = sbr.rel (%p339) target = $region48
        $region47: #{multi_head_attention.5} parent=43 // pred_region
          %s342 = sand.u32 %s113, 1
          %s343 = scalar_lea.sflag [#allocation4], %s342
          %s344 = sand.u32 %s113, 1
          %s345 = smul.addr %s344, 8
          %s346 = scalar_lea.vmem [#allocation3], %s345
          %347 = dma.done %s343, 128
        $region48: #{multi_head_attention.5} parent=43 // pred_fallthru
          _
      $region44: #{multi_head_attention.5} parent=5 // pred_fallthru
        _
    $region6: #{multi_head_attention.5} parent=1 // loop_footer
      %s15 = sadd.s32 1, %s11
    $region7: #{multi_head_attention.5} parent=1 // loop_footer_branch
      %10 = sbr.rel target = $region3
    $region8: #{multi_head_attention.5} parent=1 // loop_exit
      _
    %348 = vsyncpa [#allocation4], 1
    %s349 = scalar_lea.sflag [#allocation4], 1
    %350 = vsyncpa %s349, 1

// kernel: multi_head_attention.3
$region0: #{multi_head_attention.3}
  #allocation0 [shape = 'u32[]', space=smem, size = 0x4, offset = 0x4, fixed_abs, tag = 'smem constant byte address 0x4 - core index']
  #allocation1 [shape = 'u32[144,128]{1,0:T(1,128)}', space=vmem, size = 0x12000, scoped, tag = 'internal scratch']
  #allocation2 [shape = 'f32[8,8]{1,0:T(8,128)}', space=vmem, size = 0x1000, scoped, tag = 'scratch operand']
  %s0 = inlined_call_operand.vmem [shape: f32[2,8,32], index: 0, kind: input, shape index: {}]
  %s1 = inlined_call_operand.vmem [shape: f32[12,32,8], index: 1, kind: input, shape index: {}]
  %s2 = inlined_call_operand.vmem [shape: f32[8,8], index: 2, kind: input, shape index: {}]
  %s3 = inlined_call_operand.vmem [shape: f32[8,8], index: 3, kind: input, shape index: {}]
  %s4 = inlined_call_operand.vmem [shape: f32[8,8], index: 4, kind: input, shape index: {}]
  %s5 = inlined_call_operand.vmem [shape: f32[2,12,8,8], index: 5, kind: output, shape index: {}]
  %s6 = sld [smem:[#allocation0]]
  $region65: #{multi_head_attention.3} parent=0
    _
  %s8 = ssub.s32 1, %s6
  %s9 = scalar_select 0, %s8, %s6
  loop: start=0, step=1, limit=26
  $region2: #{multi_head_attention.3} parent=0 // loop_pre_header
    _
  $region3: #{multi_head_attention.3} parent=0 // loop_header
    %s11 = sphi 0, %s15
    %p12 = scmp.ge.s32.totalorder %s11, 26
    %s18 = sphi 0, %s44
    %s19 = sphi 0, %s40
    %s20 = sphi 0, %s36
    %s21 = sphi 0, %s32
    %s22 = sphi 0, %s18
    %s23 = sphi 0, %s19
    %s24 = sphi 0, %s20
    %s25 = sphi 0, %s21
    %s26 = sphi 0, %s22
    %s27 = sphi 0, %s23
    %s28 = sphi 0, %s24
    %s29 = sphi 0, %s25
    %s51 = sphi 0, %s53
    %s54 = sphi 0, %s51
    %s55 = sphi 0, %s54
    %s71 = sphi 0, %s55
    %s79 = sphi 0, %s81
    %s82 = sphi 0, %s79
    %s83 = sphi 0, %s82
    %s99 = sphi 0, %s83
    %s105 = sphi 0, %s107
    %s108 = sphi 0, %s105
    %s109 = sphi 0, %s108
    %s125 = sphi 0, %s109
    %s131 = sphi 0, %s133
    %s134 = sphi 0, %s131
    %s135 = sphi 0, %s134
    %s151 = sphi 0, %s135
    %s155 = sphi 0, %s155
    %s157 = sphi 0, %s155
    %s158 = sphi 0, %s157
    %s172 = sphi 0, %s158
    %s182 = sphi 0, %s184
    %s185 = sphi 0, %s182
    %s186 = sphi 0, %s185
    %s202 = sphi 0, %s186
  $region4: #{multi_head_attention.3} parent=0 // loop_header_branch
    %14 = sbr.rel (%p12) target = $region8
  $region5: #{multi_head_attention.3} parent=0 // loop_body
    %s16 = ssub.s32 %s11, 1
    %s17 = ssub.s32 %s11, 2
    %s30 = sadd.s32 1, %s21
    %p31 = scmp.ge.s32.totalorder %s30, 1
    %s32 = scalar_select %p31, 0, %s30
    %s33 = sadd.s32 1, %s20
    %s34 = scalar_select %p31, %s33, %s20
    %p35 = scmp.ge.s32.totalorder %s34, 1
    %s36 = scalar_select %p35, 0, %s34
    %s37 = sadd.s32 1, %s19
    %s38 = scalar_select %p35, %s37, %s19
    %p39 = scmp.ge.s32.totalorder %s38, 12
    %s40 = scalar_select %p39, 0, %s38
    %s41 = sadd.s32 1, %s18
    %s42 = scalar_select %p39, %s41, %s18
    %p43 = scmp.ge.s32.totalorder %s42, 2
    %s44 = scalar_select %p43, 0, %s42
    %s45 = ssub.s32 %s18, %s44
    %s46 = ssub.s32 %s20, %s36
    %s47 = sor.u32 %s45, %s46
    %s48 = ssub.s32 %s21, %s32
    %s49 = sor.u32 %s47, %s48
    %p50 = scmp.eq.s32.totalorder %s49, 0
    %s52 = sadd.s32 %s51, 1
    %s53 = scalar_select %p50, %s51, %s52
    %p56 = pneg %p50
    %p57 = scmp.eq.s32.totalorder %s11, 23
    %p58 = por %p56, %p57
    %p59 = scmp.ne.s32.totalorder %s51, %s54
    %p60 = scmp.eq.s32.totalorder %s11, 0
    %p61 = por %p59, %p60
    %p62 = scmp.ne.s32.totalorder %s51, %s54
    %p63 = scmp.eq.s32.totalorder %s16, 23
    %p64 = por %p62, %p63
    %p65 = scmp.ne.s32.totalorder %s54, %s55
    %p66 = scmp.eq.s32.totalorder %s16, 0
    %p67 = por %p65, %p66
    %p68 = scmp.ne.s32.totalorder %s54, %s55
    %p69 = scmp.eq.s32.totalorder %s17, 23
    %p70 = por %p68, %p69
    %p72 = scmp.ne.s32.totalorder %s55, %s71
    %p73 = scmp.eq.s32.totalorder %s17, 0
    %p74 = por %p72, %p73
    %s75 = ssub.s32 %s19, %s40
    %s76 = ssub.s32 %s21, %s32
    %s77 = sor.u32 %s75, %s76
    %p78 = scmp.eq.s32.totalorder %s77, 0
    %s80 = sadd.s32 %s79, 1
    %s81 = scalar_select %p78, %s79, %s80
    %p84 = pneg %p78
    %p85 = scmp.eq.s32.totalorder %s11, 23
    %p86 = por %p84, %p85
    %p87 = scmp.ne.s32.totalorder %s79, %s82
    %p88 = scmp.eq.s32.totalorder %s11, 0
    %p89 = por %p87, %p88
    %p90 = scmp.ne.s32.totalorder %s79, %s82
    %p91 = scmp.eq.s32.totalorder %s16, 23
    %p92 = por %p90, %p91
    %p93 = scmp.ne.s32.totalorder %s82, %s83
    %p94 = scmp.eq.s32.totalorder %s16, 0
    %p95 = por %p93, %p94
    %p96 = scmp.ne.s32.totalorder %s82, %s83
    %p97 = scmp.eq.s32.totalorder %s17, 23
    %p98 = por %p96, %p97
    %p100 = scmp.ne.s32.totalorder %s83, %s99
    %p101 = scmp.eq.s32.totalorder %s17, 0
    %p102 = por %p100, %p101
    %s103 = ssub.s32 %s20, %s36
    %p104 = scmp.eq.s32.totalorder %s103, 0
    %s106 = sadd.s32 %s105, 1
    %s107 = scalar_select %p104, %s105, %s106
    %p110 = pneg %p104
    %p111 = scmp.eq.s32.totalorder %s11, 23
    %p112 = por %p110, %p111
    %p113 = scmp.ne.s32.totalorder %s105, %s108
    %p114 = scmp.eq.s32.totalorder %s11, 0
    %p115 = por %p113, %p114
    %p116 = scmp.ne.s32.totalorder %s105, %s108
    %p117 = scmp.eq.s32.totalorder %s16, 23
    %p118 = por %p116, %p117
    %p119 = scmp.ne.s32.totalorder %s108, %s109
    %p120 = scmp.eq.s32.totalorder %s16, 0
    %p121 = por %p119, %p120
    %p122 = scmp.ne.s32.totalorder %s108, %s109
    %p123 = scmp.eq.s32.totalorder %s17, 23
    %p124 = por %p122, %p123
    %p126 = scmp.ne.s32.totalorder %s109, %s125
    %p127 = scmp.eq.s32.totalorder %s17, 0
    %p128 = por %p126, %p127
    %s129 = ssub.s32 %s20, %s36
    %p130 = scmp.eq.s32.totalorder %s129, 0
    %s132 = sadd.s32 %s131, 1
    %s133 = scalar_select %p130, %s131, %s132
    %p136 = pneg %p130
    %p137 = scmp.eq.s32.totalorder %s11, 23
    %p138 = por %p136, %p137
    %p139 = scmp.ne.s32.totalorder %s131, %s134
    %p140 = scmp.eq.s32.totalorder %s11, 0
    %p141 = por %p139, %p140
    %p142 = scmp.ne.s32.totalorder %s131, %s134
    %p143 = scmp.eq.s32.totalorder %s16, 23
    %p144 = por %p142, %p143
    %p145 = scmp.ne.s32.totalorder %s134, %s135
    %p146 = scmp.eq.s32.totalorder %s16, 0
    %p147 = por %p145, %p146
    %p148 = scmp.ne.s32.totalorder %s134, %s135
    %p149 = scmp.eq.s32.totalorder %s17, 23
    %p150 = por %p148, %p149
    %p152 = scmp.ne.s32.totalorder %s135, %s151
    %p153 = scmp.eq.s32.totalorder %s17, 0
    %p154 = por %p152, %p153
    %s156 = sadd.s32 %s155, 1
    %p159 = scmp.eq.s32.totalorder %s11, 23
    %p160 = scmp.ne.s32.totalorder %s155, %s157
    %p161 = scmp.eq.s32.totalorder %s11, 0
    %p162 = por %p160, %p161
    %p163 = scmp.ne.s32.totalorder %s155, %s157
    %p164 = scmp.eq.s32.totalorder %s16, 23
    %p165 = por %p163, %p164
    %p166 = scmp.ne.s32.totalorder %s157, %s158
    %p167 = scmp.eq.s32.totalorder %s16, 0
    %p168 = por %p166, %p167
    %p169 = scmp.ne.s32.totalorder %s157, %s158
    %p170 = scmp.eq.s32.totalorder %s17, 23
    %p171 = por %p169, %p170
    %p173 = scmp.ne.s32.totalorder %s158, %s172
    %p174 = scmp.eq.s32.totalorder %s17, 0
    %p175 = por %p173, %p174
    %s176 = ssub.s32 %s18, %s44
    %s177 = ssub.s32 %s19, %s40
    %s178 = sor.u32 %s176, %s177
    %s179 = ssub.s32 %s20, %s36
    %s180 = sor.u32 %s178, %s179
    %p181 = scmp.eq.s32.totalorder %s180, 0
    %s183 = sadd.s32 %s182, 1
    %s184 = scalar_select %p181, %s182, %s183
    %p187 = pneg %p181
    %p188 = scmp.eq.s32.totalorder %s11, 23
    %p189 = por %p187, %p188
    %p190 = scmp.ne.s32.totalorder %s182, %s185
    %p191 = scmp.eq.s32.totalorder %s11, 0
    %p192 = por %p190, %p191
    %p193 = scmp.ne.s32.totalorder %s182, %s185
    %p194 = scmp.eq.s32.totalorder %s16, 23
    %p195 = por %p193, %p194
    %p196 = scmp.ne.s32.totalorder %s185, %s186
    %p197 = scmp.eq.s32.totalorder %s16, 0
    %p198 = por %p196, %p197
    %p199 = scmp.ne.s32.totalorder %s185, %s186
    %p200 = scmp.eq.s32.totalorder %s17, 23
    %p201 = por %p199, %p200
    %p203 = scmp.ne.s32.totalorder %s186, %s202
    %p204 = scmp.eq.s32.totalorder %s17, 0
    %p205 = por %p203, %p204
    %p206 = scmp.le.s32.totalorder 1, %s11
    %p207 = scmp.lt.s32.totalorder %s11, 25
    %p208 = pnand %p206, %p207
    %p209 = pneg %p208
    // Predicated region
    $region9: #{multi_head_attention.3} parent=5 // pred_check
      _
    $region10: #{multi_head_attention.3} parent=5 // pred_check_branch
      %211 = sbr.rel (%p208) target = $region12
    $region11: #{multi_head_attention.3} parent=5 // pred_region
      %s212 = ssub.s32 %s11, 1
      // Predicated region
      $region13: #{multi_head_attention.3} parent=11 // pred_check
        %p213 = pneg %p121
      $region14: #{multi_head_attention.3} parent=11 // pred_check_branch
        %215 = sbr.rel (%p213) target = $region16
      $region15: #{multi_head_attention.3} parent=11 // pred_region
        %p216 = scmp.lt.s32.totalorder %s24, 0
        %s217 = scalar_select %p216, %s24, 0
        %s218 = smul.addr %s217, 8
        %s219 = scalar_lea.vmem %s2, %s218
      $region16: #{multi_head_attention.3} parent=11 // pred_fallthru
        _
      // Predicated region
      $region17: #{multi_head_attention.3} parent=11 // pred_check
        %p220 = pneg %p147
      $region18: #{multi_head_attention.3} parent=11 // pred_check_branch
        %222 = sbr.rel (%p220) target = $region20
      $region19: #{multi_head_attention.3} parent=11 // pred_region
        %p223 = scmp.lt.s32.totalorder %s24, 0
        %s224 = scalar_select %p223, %s24, 0
        %s225 = smul.addr %s224, 8
        %s226 = scalar_lea.vmem %s3, %s225
      $region20: #{multi_head_attention.3} parent=11 // pred_fallthru
        _
      // Predicated region
      $region21: #{multi_head_attention.3} parent=11 // pred_check
        %p227 = pneg %p168
      $region22: #{multi_head_attention.3} parent=11 // pred_check_branch
        %229 = sbr.rel (%p227) target = $region24
      $region23: #{multi_head_attention.3} parent=11 // pred_region
        _
      $region24: #{multi_head_attention.3} parent=11 // pred_fallthru
        _
    $region12: #{multi_head_attention.3} parent=5 // pred_fallthru
      _
    %p230 = scmp.lt.s32.totalorder %s11, 24
    // Predicated region
    $region25: #{multi_head_attention.3} parent=5 // pred_check
      %p231 = pneg %p230
    $region26: #{multi_head_attention.3} parent=5 // pred_check_branch
      %233 = sbr.rel (%p231) target = $region28
    $region27: #{multi_head_attention.3} parent=5 // pred_region
      // Predicated region
      $region29: #{multi_head_attention.3} parent=27 // pred_check
        %p234 = pneg %p61
      $region30: #{multi_head_attention.3} parent=27 // pred_check_branch
        %236 = sbr.rel (%p234) target = $region32
      $region31: #{multi_head_attention.3} parent=27 // pred_region
        %p237 = scmp.lt.s32.totalorder %s18, 1
        %s238 = scalar_select %p237, %s18, 1
        %p239 = scmp.lt.s32.totalorder %s20, 0
        %s240 = scalar_select %p239, %s20, 0
        %p241 = scmp.lt.s32.totalorder %s21, 0
        %s242 = scalar_select %p241, %s21, 0
        %s243 = sadd.s32 %s242, %s240
        %s244 = sadd.s32 %s243, %s238
        %s245 = smul.addr %s244, 8
        %s246 = scalar_lea.vmem %s0, %s245
      $region32: #{multi_head_attention.3} parent=27 // pred_fallthru
        _
      // Predicated region
      $region33: #{multi_head_attention.3} parent=27 // pred_check
        %p247 = pneg %p89
      $region34: #{multi_head_attention.3} parent=27 // pred_check_branch
        %249 = sbr.rel (%p247) target = $region36
      $region35: #{multi_head_attention.3} parent=27 // pred_region
        %s250 = smul.u32 4, %s21
        %p251 = scmp.lt.s32.totalorder %s19, 11
        %s252 = scalar_select %p251, %s19, 11
        %p253 = scmp.lt.s32.totalorder %s250, 3
        %s254 = scalar_select %p253, %s250, 3
        %s255 = smul.addr %s252, 4
        %s256 = sadd.s32 %s254, %s255
        %s257 = smul.addr %s256, 8
        %s258 = scalar_lea.vmem %s1, %s257
        %s259 = smul.u32 4, %s21
      $region36: #{multi_head_attention.3} parent=27 // pred_fallthru
        _
    $region28: #{multi_head_attention.3} parent=5 // pred_fallthru
      _
    %p260 = scmp.le.s32.totalorder 1, %s11
    %p261 = scmp.lt.s32.totalorder %s11, 25
    %p262 = pnand %p260, %p261
    %p263 = pneg %p262
    // Predicated region
    $region37: #{multi_head_attention.3} parent=5 // pred_check
      _
    $region38: #{multi_head_attention.3} parent=5 // pred_check_branch
      %265 = sbr.rel (%p262) target = $region40
    $region39: #{multi_head_attention.3} parent=5 // pred_region
      %s266 = ssub.s32 %s11, 1
      %p267 = scmp.lt.s32.totalorder %s22, 1
      %s268 = scalar_select %p267, %s22, 1
      %p269 = scmp.lt.s32.totalorder %s24, 0
      %s270 = scalar_select %p269, %s24, 0
      %p271 = scmp.lt.s32.totalorder %s25, 0
      %s272 = scalar_select %p271, %s25, 0
      %s273 = sadd.s32 %s272, %s270
      %s274 = sadd.s32 %s273, %s268
      %s275 = smul.addr %s274, 8
      %s276 = scalar_lea.vmem %s0, %s275
      %p277 = pneg %p67
      %p278 = pneg %p64
      %s279 = smul.u32 4, %s25
      %p280 = scmp.lt.s32.totalorder %s23, 11
      %s281 = scalar_select %p280, %s23, 11
      %p282 = scmp.lt.s32.totalorder %s279, 3
      %s283 = scalar_select %p282, %s279, 3
      %s284 = smul.addr %s281, 4
      %s285 = sadd.s32 %s283, %s284
      %s286 = smul.addr %s285, 8
      %s287 = scalar_lea.vmem %s1, %s286
      %p288 = pneg %p95
      %p289 = pneg %p92
      %p290 = scmp.lt.s32.totalorder %s24, 0
      %s291 = scalar_select %p290, %s24, 0
      %s292 = smul.addr %s291, 8
      %s293 = scalar_lea.vmem %s2, %s292
      %p294 = pneg %p121
      %p295 = pneg %p118
      %p296 = scmp.lt.s32.totalorder %s24, 0
      %s297 = scalar_select %p296, %s24, 0
      %s298 = smul.addr %s297, 8
      %s299 = scalar_lea.vmem %s3, %s298
      %p300 = pneg %p147
      %p301 = pneg %p144
      %p302 = pneg %p168
      %p303 = pneg %p165
      %p304 = pneg %p198
      %p305 = pneg %p195
      %p306 = scmp.lt.s32.totalorder %s22, 1
      %s307 = scalar_select %p306, %s22, 1
      %p308 = scmp.lt.s32.totalorder %s23, 11
      %s309 = scalar_select %p308, %s23, 11
      %p310 = scmp.lt.s32.totalorder %s24, 0
      %s311 = scalar_select %p310, %s24, 0
      %s312 = sadd.s32 %s311, %s309
      %s313 = smul.addr %s307, 12
      %s314 = sadd.s32 %s312, %s313
      %s315 = smul.addr %s314, 8
      %s316 = scalar_lea.vmem %s5, %s315
      %p317 = scmp.lt.s32.totalorder %s22, 1
      %s318 = scalar_select %p317, %s22, 1
      %p319 = scmp.lt.s32.totalorder %s24, 0
      %s320 = scalar_select %p319, %s24, 0
      %p321 = scmp.lt.s32.totalorder %s25, 0
      %s322 = scalar_select %p321, %s25, 0
      %s323 = sadd.s32 %s322, %s320
      %s324 = sadd.s32 %s323, %s318
      %s325 = smul.addr %s324, 8
      %s326 = scalar_lea.vmem %s0, %s325
      %s327 = smul.u32 4, %s25
      %p328 = scmp.lt.s32.totalorder %s23, 11
      %s329 = scalar_select %p328, %s23, 11
      %p330 = scmp.lt.s32.totalorder %s327, 3
      %s331 = scalar_select %p330, %s327, 3
      %s332 = smul.addr %s329, 4
      %s333 = sadd.s32 %s331, %s332
      %s334 = smul.addr %s333, 8
      %s335 = scalar_lea.vmem %s1, %s334
      %s336 = smul.u32 4, %s25
      %p337 = scmp.lt.s32.totalorder %s24, 0
      %s338 = scalar_select %p337, %s24, 0
      %s339 = smul.addr %s338, 8
      %s340 = scalar_lea.vmem %s2, %s339
      %p341 = scmp.lt.s32.totalorder %s24, 0
      %s342 = scalar_select %p341, %s24, 0
      %s343 = smul.addr %s342, 8
      %s344 = scalar_lea.vmem %s3, %s343
      %p345 = scmp.lt.s32.totalorder %s22, 1
      %s346 = scalar_select %p345, %s22, 1
      %p347 = scmp.lt.s32.totalorder %s23, 11
      %s348 = scalar_select %p347, %s23, 11
      %p349 = scmp.lt.s32.totalorder %s24, 0
      %s350 = scalar_select %p349, %s24, 0
      %s351 = sadd.s32 %s350, %s348
      %s352 = smul.addr %s346, 12
      %s353 = sadd.s32 %s351, %s352
      %s354 = smul.addr %s353, 8
      %s355 = scalar_lea.vmem %s5, %s354
      %p356 = scmp.eq.s32.totalorder %s25, 0
      // Predicated region
      $region41: #{multi_head_attention.3} parent=39 // pred_check
        %p357 = pneg %p356
      $region42: #{multi_head_attention.3} parent=39 // pred_check_branch
        %359 = sbr.rel (%p357) target = $region44
      $region43: #{multi_head_attention.3} parent=39 // pred_region
        %vm360 = vcmask 64512
        %361 = vst.msk [vmem:[#allocation2] sm:$0xff] %vm360, 0.0
      $region44: #{multi_head_attention.3} parent=39 // pred_fallthru
        _
      %v362 = vld [vmem:[#allocation2] sm:$0xff]
      %v363 = vld [vmem:[%s326] sm:$0xff]
      %v364 = vld [vmem:[%s335] sm:$0xff]
      %v365 = vld [vmem:[%s335 + $0x8] sm:$0xff]
      %v366 = vld [vmem:[%s335 + $0x10] sm:$0xff]
      %v367 = vld [vmem:[%s335 + $0x18] sm:$0xff]
      %vm368 = vcmask 261120
      %v370 = vsel %vm368, %v363, 0
      %372 = vmatprep.subr.mxu0 0.0
      %373 = vmatpush1.msra.mxu0 %v364
      %374 = vmatprep.subr.mxu0 0.0
      %375 = vmatpush1.msra.mxu0 %v365
      %376 = vmatprep.subr.mxu0 0.0
      %377 = vmatpush1.msra.mxu0 %v366
      %378 = vmatprep.subr.mxu0 0.0
      %379 = vmatpush1.msra.mxu0 %v367
      %380 = vmatprep.subr.mxu0 0.0
      %381 = vmatpush1.msra.mxu0 0.0
      %382 = vmatprep.subr.mxu0 0.0
      %383 = vmatpush1.msra.mxu0 0.0
      %384 = vmatprep.subr.mxu0 0.0
      %385 = vmatpush1.msra.mxu0 0.0
      %386 = vmatprep.subr.mxu0 0.0
      %387 = vmatpush1.msra.mxu0 0.0
      %388 = vmatprep.subr.mxu0 0.0
      %389 = vmatpush1.msra.mxu0 0.0
      %390 = vmatprep.subr.mxu0 0.0
      %391 = vmatpush1.msra.mxu0 0.0
      %392 = vmatprep.subr.mxu0 0.0
      %393 = vmatpush1.msra.mxu0 0.0
      %394 = vmatprep.subr.mxu0 0.0
      %395 = vmatpush1.msra.mxu0 0.0
      %396 = vmatprep.subr.mxu0 0.0
      %397 = vmatpush1.msra.mxu0 0.0
      %398 = vmatprep.subr.mxu0 0.0
      %399 = vmatpush1.msra.mxu0 0.0
      %400 = vmatprep.subr.mxu0 0.0
      %401 = vmatpush1.msra.mxu0 0.0
      %402 = vmatprep.subr.mxu0 0.0
      %403 = vmatpush1.msra.mxu0 0.0
      %404 = vmatprep.subr.mxu0 0.0
      %405 = vmatpush1.msra.mxu0 0.0
      %406 = vmatprep.subr.mxu0 0.0
      %407 = vmatpush1.msra.mxu0 0.0
      %408 = vmatprep.subr.mxu0 0.0
      %409 = vmatpush1.msra.mxu0 0.0
      %410 = vmatprep.subr.mxu0 0.0
      %411 = vmatpush1.msra.mxu0 0.0
      %412 = vmatprep.subr.mxu0 0.0
      %413 = vmatpush1.msra.mxu0 0.0
      %414 = vmatprep.subr.mxu0 0.0
      %415 = vmatpush1.msra.mxu0 0.0
      %416 = vmatprep.subr.mxu0 0.0
      %417 = vmatpush1.msra.mxu0 0.0
      %418 = vmatprep.subr.mxu0 0.0
      %419 = vmatpush1.msra.mxu0 0.0
      %420 = vmatprep.subr.mxu0 0.0
      %421 = vmatpush1.msra.mxu0 0.0
      %422 = vmatprep.subr.mxu0 0.0
      %423 = vmatpush1.msra.mxu0 0.0
      %424 = vmatprep.subr.mxu0 0.0
      %425 = vmatpush1.msra.mxu0 0.0
      %426 = vmatprep.subr.mxu0 0.0
      %427 = vmatpush1.msra.mxu0 0.0
      %428 = vmatprep.subr.mxu0 0.0
      %429 = vmatpush1.msra.mxu0 0.0
      %430 = vmatprep.subr.mxu0 0.0
      %431 = vmatpush1.msra.mxu0 0.0
      %432 = vmatprep.subr.mxu0 0.0
      %433 = vmatpush1.msra.mxu0 0.0
      %434 = vmatprep.subr.mxu0 0.0
      %435 = vmatpush1.msra.mxu0 0.0
      %436 = vmatprep.mubr.f32.mxu0 0.0
      %437 = vmatmul.mubr.f32.gmra.mrb[0].mxu0 %v370
      %v438 = vpop.f32.mrb[0].mxu0
      %v439 = vadd.f32 0.0, %v438
      %v440 = vpop.f32.mrb[0].mxu0
      %441 = vdwg.mxu0
      %v442 = vadd.f32 %v362, %v439
      %vm443 = vcmask 64512
      %444 = vst.msk [vmem:[#allocation2] sm:$0xff] %vm443, %v442
      %p445 = scmp.lt.s32.totalorder %s23, 8
      %p446 = pnand %p356, %p445
      %p447 = pneg %p446
      // Predicated region
      $region45: #{multi_head_attention.3} parent=39 // pred_check
        _
      $region46: #{multi_head_attention.3} parent=39 // pred_check_branch
        %449 = sbr.rel (%p446) target = $region48
      $region47: #{multi_head_attention.3} parent=39 // pred_region
        %v450 = vld [vmem:[#allocation2] sm:$0xff]
        %v451 = vld [vmem:[%s4] sm:$0xff]
        %v453 = vsel %vm443, %v450, 0
        %455 = vmatprep.subr.mxu0 0.0
        %456 = vmatpush1.msra.mxu0 %v451
        %457 = vmatprep.subr.mxu0 0.0
        %458 = vmatpush1.msra.mxu0 0.0
        %459 = vmatprep.subr.mxu0 0.0
        %460 = vmatpush1.msra.mxu0 0.0
        %461 = vmatprep.subr.mxu0 0.0
        %462 = vmatpush1.msra.mxu0 0.0
        %463 = vmatprep.subr.mxu0 0.0
        %464 = vmatpush1.msra.mxu0 0.0
        %465 = vmatprep.subr.mxu0 0.0
        %466 = vmatpush1.msra.mxu0 0.0
        %467 = vmatprep.subr.mxu0 0.0
        %468 = vmatpush1.msra.mxu0 0.0
        %469 = vmatprep.subr.mxu0 0.0
        %470 = vmatpush1.msra.mxu0 0.0
        %471 = vmatprep.subr.mxu0 0.0
        %472 = vmatpush1.msra.mxu0 0.0
        %473 = vmatprep.subr.mxu0 0.0
        %474 = vmatpush1.msra.mxu0 0.0
        %475 = vmatprep.subr.mxu0 0.0
        %476 = vmatpush1.msra.mxu0 0.0
        %477 = vmatprep.subr.mxu0 0.0
        %478 = vmatpush1.msra.mxu0 0.0
        %479 = vmatprep.subr.mxu0 0.0
        %480 = vmatpush1.msra.mxu0 0.0
        %481 = vmatprep.subr.mxu0 0.0
        %482 = vmatpush1.msra.mxu0 0.0
        %483 = vmatprep.subr.mxu0 0.0
        %484 = vmatpush1.msra.mxu0 0.0
        %485 = vmatprep.subr.mxu0 0.0
        %486 = vmatpush1.msra.mxu0 0.0
        %487 = vmatprep.subr.mxu0 0.0
        %488 = vmatpush1.msra.mxu0 0.0
        %489 = vmatprep.subr.mxu0 0.0
        %490 = vmatpush1.msra.mxu0 0.0
        %491 = vmatprep.subr.mxu0 0.0
        %492 = vmatpush1.msra.mxu0 0.0
        %493 = vmatprep.subr.mxu0 0.0
        %494 = vmatpush1.msra.mxu0 0.0
        %495 = vmatprep.subr.mxu0 0.0
        %496 = vmatpush1.msra.mxu0 0.0
        %497 = vmatprep.subr.mxu0 0.0
        %498 = vmatpush1.msra.mxu0 0.0
        %499 = vmatprep.subr.mxu0 0.0
        %500 = vmatpush1.msra.mxu0 0.0
        %501 = vmatprep.subr.mxu0 0.0
        %502 = vmatpush1.msra.mxu0 0.0
        %503 = vmatprep.subr.mxu0 0.0
        %504 = vmatpush1.msra.mxu0 0.0
        %505 = vmatprep.subr.mxu0 0.0
        %506 = vmatpush1.msra.mxu0 0.0
        %507 = vmatprep.subr.mxu0 0.0
        %508 = vmatpush1.msra.mxu0 0.0
        %509 = vmatprep.subr.mxu0 0.0
        %510 = vmatpush1.msra.mxu0 0.0
        %511 = vmatprep.subr.mxu0 0.0
        %512 = vmatpush1.msra.mxu0 0.0
        %513 = vmatprep.subr.mxu0 0.0
        %514 = vmatpush1.msra.mxu0 0.0
        %515 = vmatprep.subr.mxu0 0.0
        %516 = vmatpush1.msra.mxu0 0.0
        %517 = vmatprep.subr.mxu0 0.0
        %518 = vmatpush1.msra.mxu0 0.0
        %519 = vmatprep.mubr.f32.mxu0 0.0
        %520 = vmatmul.mubr.f32.gmra.mrb[0].mxu0 %v453
        %v521 = vpop.f32.mrb[0].mxu0
        %v522 = vadd.f32 0.0, %v521
        %v523 = vpop.f32.mrb[0].mxu0
        %524 = vdwg.mxu0
        %v525 = vld [vmem:[%s340] sm:$0xff]
        %v526 = vmul.f32 %v450, %v525
        %v527 = vld [vmem:[%s344] sm:$0xff]
        %v528 = vmul.f32 %v522, %v527
        %v529 = vadd.f32 %v526, %v528
        %530 = vst.msk [vmem:[%s355] sm:$0xff] %vm443, %v529
      $region48: #{multi_head_attention.3} parent=39 // pred_fallthru
        _
      %p531 = scmp.ge.s32.totalorder %s23, 8
      %p532 = pnand %p356, %p531
      %p533 = pneg %p532
      // Predicated region
      $region49: #{multi_head_attention.3} parent=39 // pred_check
        _
      $region50: #{multi_head_attention.3} parent=39 // pred_check_branch
        %535 = sbr.rel (%p532) target = $region52
      $region51: #{multi_head_attention.3} parent=39 // pred_region
        %v536 = vld [vmem:[#allocation2] sm:$0xff]
        %537 = vst.msk [vmem:[%s355] sm:$0xff] %vm443, %v536
      $region52: #{multi_head_attention.3} parent=39 // pred_fallthru
        _
      %p538 = scmp.lt.s32.totalorder %s22, 1
      %s539 = scalar_select %p538, %s22, 1
      %p540 = scmp.lt.s32.totalorder %s23, 11
      %s541 = scalar_select %p540, %s23, 11
      %p542 = scmp.lt.s32.totalorder %s24, 0
      %s543 = scalar_select %p542, %s24, 0
      %s544 = sadd.s32 %s543, %s541
      %s545 = smul.addr %s539, 12
      %s546 = sadd.s32 %s544, %s545
      %s547 = smul.addr %s546, 8
      %s548 = scalar_lea.vmem %s5, %s547
      // Predicated region
      $region53: #{multi_head_attention.3} parent=39 // pred_check
        %p549 = pneg %p195
      $region54: #{multi_head_attention.3} parent=39 // pred_check_branch
        %551 = sbr.rel (%p549) target = $region56
      $region55: #{multi_head_attention.3} parent=39 // pred_region
        _
      $region56: #{multi_head_attention.3} parent=39 // pred_fallthru
        _
    $region40: #{multi_head_attention.3} parent=5 // pred_fallthru
      _
    %p552 = scmp.le.s32.totalorder 2, %s11
    // Predicated region
    $region57: #{multi_head_attention.3} parent=5 // pred_check
      %p553 = pneg %p552
    $region58: #{multi_head_attention.3} parent=5 // pred_check_branch
      %555 = sbr.rel (%p553) target = $region60
    $region59: #{multi_head_attention.3} parent=5 // pred_region
      %s556 = ssub.s32 %s11, 2
      // Predicated region
      $region61: #{multi_head_attention.3} parent=59 // pred_check
        %p557 = pneg %p201
      $region62: #{multi_head_attention.3} parent=59 // pred_check_branch
        %559 = sbr.rel (%p557) target = $region64
      $region63: #{multi_head_attention.3} parent=59 // pred_region
        %p560 = scmp.lt.s32.totalorder %s26, 1
        %s561 = scalar_select %p560, %s26, 1
        %p562 = scmp.lt.s32.totalorder %s27, 11
        %s563 = scalar_select %p562, %s27, 11
        %p564 = scmp.lt.s32.totalorder %s28, 0
        %s565 = scalar_select %p564, %s28, 0
        %s566 = sadd.s32 %s565, %s563
        %s567 = smul.addr %s561, 12
        %s568 = sadd.s32 %s566, %s567
        %s569 = smul.addr %s568, 8
        %s570 = scalar_lea.vmem %s5, %s569
      $region64: #{multi_head_attention.3} parent=59 // pred_fallthru
        _
    $region60: #{multi_head_attention.3} parent=5 // pred_fallthru
      _
  $region6: #{multi_head_attention.3} parent=0 // loop_footer
    %s15 = sadd.s32 1, %s11
  $region7: #{multi_head_attention.3} parent=0 // loop_footer_branch
    %10 = sbr.rel target = $region3
  $region8: #{multi_head_attention.3} parent=0 // loop_exit
    _

// kernel: multi_head_attention.4
$region0: #{multi_head_attention.4}
  #allocation0 [shape = 'u32[]', space=smem, size = 0x4, offset = 0x4, fixed_abs, tag = 'smem constant byte address 0x4 - core index']
  #allocation1 [shape = 'u32[144,128]{1,0:T(1,128)}', space=vmem, size = 0x12000, scoped, tag = 'internal scratch']
  #allocation2 [shape = 'f32[8,1]{1,0:T(8,128)}', space=vmem, size = 0x1000, scoped, tag = 'scratch operand']
  #allocation3 [shape = 'f32[8,1]{1,0:T(8,128)}', space=vmem, size = 0x1000, scoped, tag = 'scratch operand']
  #allocation4 [shape = 'f32[8,8]{1,0:T(8,128)}', space=vmem, size = 0x1000, scoped, tag = 'scratch operand']
  %s0 = inlined_call_operand.vmem [shape: f32[2,12,8,8], index: 0, kind: input, shape index: {}, may-alias: {0,1,2}]
  %s1 = inlined_call_operand.vmem [shape: f32[2,12,8,8], index: 1, kind: input, shape index: {}, may-alias: {0,1,2}]
  %s2 = inlined_call_operand.vmem [shape: f32[2,12,8,8], index: 2, kind: input, shape index: {}, may-alias: {0,1,2}]
  %s3 = inlined_call_operand.vmem [shape: f32[2,4,8,8], index: 3, kind: output, shape index: {}]
  %s4 = sld [smem:[#allocation0]]
  $region57: #{multi_head_attention.4} parent=0
    _
  %s6 = ssub.s32 1, %s4
  %s7 = scalar_select 0, %s6, %s4
  loop: start=0, step=1, limit=10
  $region2: #{multi_head_attention.4} parent=0 // loop_pre_header
    _
  $region3: #{multi_head_attention.4} parent=0 // loop_header
    %s9 = sphi 0, %s13
    %p10 = scmp.ge.s32.totalorder %s9, 10
    %s16 = sphi 0, %s42
    %s17 = sphi 0, %s38
    %s18 = sphi 0, %s34
    %s19 = sphi 0, %s30
    %s20 = sphi 0, %s16
    %s21 = sphi 0, %s17
    %s22 = sphi 0, %s18
    %s23 = sphi 0, %s19
    %s24 = sphi 0, %s20
    %s25 = sphi 0, %s21
    %s26 = sphi 0, %s22
    %s27 = sphi 0, %s23
    %s49 = sphi 0, %s51
    %s52 = sphi 0, %s49
    %s53 = sphi 0, %s52
    %s69 = sphi 0, %s53
    %s81 = sphi 0, %s83
    %s84 = sphi 0, %s81
    %s85 = sphi 0, %s84
    %s101 = sphi 0, %s85
    %s113 = sphi 0, %s115
    %s116 = sphi 0, %s113
    %s117 = sphi 0, %s116
    %s133 = sphi 0, %s117
    %s143 = sphi 0, %s145
    %s146 = sphi 0, %s143
    %s147 = sphi 0, %s146
    %s163 = sphi 0, %s147
  $region4: #{multi_head_attention.4} parent=0 // loop_header_branch
    %12 = sbr.rel (%p10) target = $region8
  $region5: #{multi_head_attention.4} parent=0 // loop_body
    %s14 = ssub.s32 %s9, 1
    %s15 = ssub.s32 %s9, 2
    %s28 = sadd.s32 1, %s19
    %p29 = scmp.ge.s32.totalorder %s28, 1
    %s30 = scalar_select %p29, 0, %s28
    %s31 = sadd.s32 1, %s18
    %s32 = scalar_select %p29, %s31, %s18
    %p33 = scmp.ge.s32.totalorder %s32, 1
    %s34 = scalar_select %p33, 0, %s32
    %s35 = sadd.s32 1, %s17
    %s36 = scalar_select %p33, %s35, %s17
    %p37 = scmp.ge.s32.totalorder %s36, 4
    %s38 = scalar_select %p37, 0, %s36
    %s39 = sadd.s32 1, %s16
    %s40 = scalar_select %p37, %s39, %s16
    %p41 = scmp.ge.s32.totalorder %s40, 2
    %s42 = scalar_select %p41, 0, %s40
    %s43 = ssub.s32 %s16, %s42
    %s44 = ssub.s32 %s17, %s38
    %s45 = sor.u32 %s43, %s44
    %s46 = ssub.s32 %s18, %s34
    %s47 = sor.u32 %s45, %s46
    %p48 = scmp.eq.s32.totalorder %s47, 0
    %s50 = sadd.s32 %s49, 1
    %s51 = scalar_select %p48, %s49, %s50
    %p54 = pneg %p48
    %p55 = scmp.eq.s32.totalorder %s9, 7
    %p56 = por %p54, %p55
    %p57 = scmp.ne.s32.totalorder %s49, %s52
    %p58 = scmp.eq.s32.totalorder %s9, 0
    %p59 = por %p57, %p58
    %p60 = scmp.ne.s32.totalorder %s49, %s52
    %p61 = scmp.eq.s32.totalorder %s14, 7
    %p62 = por %p60, %p61
    %p63 = scmp.ne.s32.totalorder %s52, %s53
    %p64 = scmp.eq.s32.totalorder %s14, 0
    %p65 = por %p63, %p64
    %p66 = scmp.ne.s32.totalorder %s52, %s53
    %p67 = scmp.eq.s32.totalorder %s15, 7
    %p68 = por %p66, %p67
    %p70 = scmp.ne.s32.totalorder %s53, %s69
    %p71 = scmp.eq.s32.totalorder %s15, 0
    %p72 = por %p70, %p71
    %s73 = sadd.s32 %s17, 4
    %s74 = sadd.s32 %s38, 4
    %s75 = ssub.s32 %s16, %s42
    %s76 = ssub.s32 %s73, %s74
    %s77 = sor.u32 %s75, %s76
    %s78 = ssub.s32 %s19, %s30
    %s79 = sor.u32 %s77, %s78
    %p80 = scmp.eq.s32.totalorder %s79, 0
    %s82 = sadd.s32 %s81, 1
    %s83 = scalar_select %p80, %s81, %s82
    %p86 = pneg %p80
    %p87 = scmp.eq.s32.totalorder %s9, 7
    %p88 = por %p86, %p87
    %p89 = scmp.ne.s32.totalorder %s81, %s84
    %p90 = scmp.eq.s32.totalorder %s9, 0
    %p91 = por %p89, %p90
    %p92 = scmp.ne.s32.totalorder %s81, %s84
    %p93 = scmp.eq.s32.totalorder %s14, 7
    %p94 = por %p92, %p93
    %p95 = scmp.ne.s32.totalorder %s84, %s85
    %p96 = scmp.eq.s32.totalorder %s14, 0
    %p97 = por %p95, %p96
    %p98 = scmp.ne.s32.totalorder %s84, %s85
    %p99 = scmp.eq.s32.totalorder %s15, 7
    %p100 = por %p98, %p99
    %p102 = scmp.ne.s32.totalorder %s85, %s101
    %p103 = scmp.eq.s32.totalorder %s15, 0
    %p104 = por %p102, %p103
    %s105 = sadd.s32 %s17, 8
    %s106 = sadd.s32 %s38, 8
    %s107 = ssub.s32 %s16, %s42
    %s108 = ssub.s32 %s105, %s106
    %s109 = sor.u32 %s107, %s108
    %s110 = ssub.s32 %s19, %s30
    %s111 = sor.u32 %s109, %s110
    %p112 = scmp.eq.s32.totalorder %s111, 0
    %s114 = sadd.s32 %s113, 1
    %s115 = scalar_select %p112, %s113, %s114
    %p118 = pneg %p112
    %p119 = scmp.eq.s32.totalorder %s9, 7
    %p120 = por %p118, %p119
    %p121 = scmp.ne.s32.totalorder %s113, %s116
    %p122 = scmp.eq.s32.totalorder %s9, 0
    %p123 = por %p121, %p122
    %p124 = scmp.ne.s32.totalorder %s113, %s116
    %p125 = scmp.eq.s32.totalorder %s14, 7
    %p126 = por %p124, %p125
    %p127 = scmp.ne.s32.totalorder %s116, %s117
    %p128 = scmp.eq.s32.totalorder %s14, 0
    %p129 = por %p127, %p128
    %p130 = scmp.ne.s32.totalorder %s116, %s117
    %p131 = scmp.eq.s32.totalorder %s15, 7
    %p132 = por %p130, %p131
    %p134 = scmp.ne.s32.totalorder %s117, %s133
    %p135 = scmp.eq.s32.totalorder %s15, 0
    %p136 = por %p134, %p135
    %s137 = ssub.s32 %s16, %s42
    %s138 = ssub.s32 %s17, %s38
    %s139 = sor.u32 %s137, %s138
    %s140 = ssub.s32 %s18, %s34
    %s141 = sor.u32 %s139, %s140
    %p142 = scmp.eq.s32.totalorder %s141, 0
    %s144 = sadd.s32 %s143, 1
    %s145 = scalar_select %p142, %s143, %s144
    %p148 = pneg %p142
    %p149 = scmp.eq.s32.totalorder %s9, 7
    %p150 = por %p148, %p149
    %p151 = scmp.ne.s32.totalorder %s143, %s146
    %p152 = scmp.eq.s32.totalorder %s9, 0
    %p153 = por %p151, %p152
    %p154 = scmp.ne.s32.totalorder %s143, %s146
    %p155 = scmp.eq.s32.totalorder %s14, 7
    %p156 = por %p154, %p155
    %p157 = scmp.ne.s32.totalorder %s146, %s147
    %p158 = scmp.eq.s32.totalorder %s14, 0
    %p159 = por %p157, %p158
    %p160 = scmp.ne.s32.totalorder %s146, %s147
    %p161 = scmp.eq.s32.totalorder %s15, 7
    %p162 = por %p160, %p161
    %p164 = scmp.ne.s32.totalorder %s147, %s163
    %p165 = scmp.eq.s32.totalorder %s15, 0
    %p166 = por %p164, %p165
    %p167 = scmp.le.s32.totalorder 1, %s9
    %p168 = scmp.lt.s32.totalorder %s9, 9
    %p169 = pnand %p167, %p168
    %p170 = pneg %p169
    // Predicated region
    $region9: #{multi_head_attention.4} parent=5 // pred_check
      _
    $region10: #{multi_head_attention.4} parent=5 // pred_check_branch
      %172 = sbr.rel (%p169) target = $region12
    $region11: #{multi_head_attention.4} parent=5 // pred_region
      %s173 = ssub.s32 %s9, 1
    $region12: #{multi_head_attention.4} parent=5 // pred_fallthru
      _
    %p174 = scmp.lt.s32.totalorder %s9, 8
    // Predicated region
    $region13: #{multi_head_attention.4} parent=5 // pred_check
      %p175 = pneg %p174
    $region14: #{multi_head_attention.4} parent=5 // pred_check_branch
      %177 = sbr.rel (%p175) target = $region16
    $region15: #{multi_head_attention.4} parent=5 // pred_region
      // Predicated region
      $region17: #{multi_head_attention.4} parent=15 // pred_check
        %p178 = pneg %p59
      $region18: #{multi_head_attention.4} parent=15 // pred_check_branch
        %180 = sbr.rel (%p178) target = $region20
      $region19: #{multi_head_attention.4} parent=15 // pred_region
        %p181 = scmp.lt.s32.totalorder %s16, 1
        %s182 = scalar_select %p181, %s16, 1
        %p183 = scmp.lt.s32.totalorder %s17, 11
        %s184 = scalar_select %p183, %s17, 11
        %p185 = scmp.lt.s32.totalorder %s18, 0
        %s186 = scalar_select %p185, %s18, 0
        %s187 = sadd.s32 %s186, %s184
        %s188 = smul.addr %s182, 12
        %s189 = sadd.s32 %s187, %s188
        %s190 = smul.addr %s189, 8
        %s191 = scalar_lea.vmem %s0, %s190
      $region20: #{multi_head_attention.4} parent=15 // pred_fallthru
        _
      // Predicated region
      $region21: #{multi_head_attention.4} parent=15 // pred_check
        %p192 = pneg %p91
      $region22: #{multi_head_attention.4} parent=15 // pred_check_branch
        %194 = sbr.rel (%p192) target = $region24
      $region23: #{multi_head_attention.4} parent=15 // pred_region
        %s195 = sadd.s32 %s17, 4
        %p196 = scmp.lt.s32.totalorder %s16, 1
        %s197 = scalar_select %p196, %s16, 1
        %p198 = scmp.lt.s32.totalorder %s195, 11
        %s199 = scalar_select %p198, %s195, 11
        %p200 = scmp.lt.s32.totalorder %s19, 0
        %s201 = scalar_select %p200, %s19, 0
        %s202 = sadd.s32 %s201, %s199
        %s203 = smul.addr %s197, 12
        %s204 = sadd.s32 %s202, %s203
        %s205 = smul.addr %s204, 8
        %s206 = scalar_lea.vmem %s1, %s205
        %s207 = sadd.s32 %s17, 4
      $region24: #{multi_head_attention.4} parent=15 // pred_fallthru
        _
      // Predicated region
      $region25: #{multi_head_attention.4} parent=15 // pred_check
        %p208 = pneg %p123
      $region26: #{multi_head_attention.4} parent=15 // pred_check_branch
        %210 = sbr.rel (%p208) target = $region28
      $region27: #{multi_head_attention.4} parent=15 // pred_region
        %s211 = sadd.s32 %s17, 8
        %p212 = scmp.lt.s32.totalorder %s16, 1
        %s213 = scalar_select %p212, %s16, 1
        %p214 = scmp.lt.s32.totalorder %s211, 11
        %s215 = scalar_select %p214, %s211, 11
        %p216 = scmp.lt.s32.totalorder %s19, 0
        %s217 = scalar_select %p216, %s19, 0
        %s218 = sadd.s32 %s217, %s215
        %s219 = smul.addr %s213, 12
        %s220 = sadd.s32 %s218, %s219
        %s221 = smul.addr %s220, 8
        %s222 = scalar_lea.vmem %s2, %s221
        %s223 = sadd.s32 %s17, 8
      $region28: #{multi_head_attention.4} parent=15 // pred_fallthru
        _
    $region16: #{multi_head_attention.4} parent=5 // pred_fallthru
      _
    %p224 = scmp.le.s32.totalorder 1, %s9
    %p225 = scmp.lt.s32.totalorder %s9, 9
    %p226 = pnand %p224, %p225
    %p227 = pneg %p226
    // Predicated region
    $region29: #{multi_head_attention.4} parent=5 // pred_check
      _
    $region30: #{multi_head_attention.4} parent=5 // pred_check_branch
      %229 = sbr.rel (%p226) target = $region32
    $region31: #{multi_head_attention.4} parent=5 // pred_region
      %s230 = ssub.s32 %s9, 1
      %p231 = scmp.lt.s32.totalorder %s20, 1
      %s232 = scalar_select %p231, %s20, 1
      %p233 = scmp.lt.s32.totalorder %s21, 11
      %s234 = scalar_select %p233, %s21, 11
      %p235 = scmp.lt.s32.totalorder %s22, 0
      %s236 = scalar_select %p235, %s22, 0
      %s237 = sadd.s32 %s236, %s234
      %s238 = smul.addr %s232, 12
      %s239 = sadd.s32 %s237, %s238
      %s240 = smul.addr %s239, 8
      %s241 = scalar_lea.vmem %s0, %s240
      %p242 = pneg %p65
      %p243 = pneg %p62
      %s244 = sadd.s32 %s21, 4
      %p245 = scmp.lt.s32.totalorder %s20, 1
      %s246 = scalar_select %p245, %s20, 1
      %p247 = scmp.lt.s32.totalorder %s244, 11
      %s248 = scalar_select %p247, %s244, 11
      %p249 = scmp.lt.s32.totalorder %s23, 0
      %s250 = scalar_select %p249, %s23, 0
      %s251 = sadd.s32 %s250, %s248
      %s252 = smul.addr %s246, 12
      %s253 = sadd.s32 %s251, %s252
      %s254 = smul.addr %s253, 8
      %s255 = scalar_lea.vmem %s1, %s254
      %p256 = pneg %p97
      %p257 = pneg %p94
      %s258 = sadd.s32 %s21, 8
      %p259 = scmp.lt.s32.totalorder %s20, 1
      %s260 = scalar_select %p259, %s20, 1
      %p261 = scmp.lt.s32.totalorder %s258, 11
      %s262 = scalar_select %p261, %s258, 11
      %p263 = scmp.lt.s32.totalorder %s23, 0
      %s264 = scalar_select %p263, %s23, 0
      %s265 = sadd.s32 %s264, %s262
      %s266 = smul.addr %s260, 12
      %s267 = sadd.s32 %s265, %s266
      %s268 = smul.addr %s267, 8
      %s269 = scalar_lea.vmem %s2, %s268
      %p270 = pneg %p129
      %p271 = pneg %p126
      %p272 = pneg %p159
      %p273 = pneg %p156
      %p274 = scmp.lt.s32.totalorder %s20, 1
      %s275 = scalar_select %p274, %s20, 1
      %p276 = scmp.lt.s32.totalorder %s21, 3
      %s277 = scalar_select %p276, %s21, 3
      %p278 = scmp.lt.s32.totalorder %s22, 0
      %s279 = scalar_select %p278, %s22, 0
      %s280 = sadd.s32 %s279, %s277
      %s281 = smul.addr %s275, 4
      %s282 = sadd.s32 %s280, %s281
      %s283 = smul.addr %s282, 8
      %s284 = scalar_lea.vmem %s3, %s283
      %p285 = scmp.lt.s32.totalorder %s20, 1
      %s286 = scalar_select %p285, %s20, 1
      %p287 = scmp.lt.s32.totalorder %s21, 11
      %s288 = scalar_select %p287, %s21, 11
      %p289 = scmp.lt.s32.totalorder %s22, 0
      %s290 = scalar_select %p289, %s22, 0
      %s291 = sadd.s32 %s290, %s288
      %s292 = smul.addr %s286, 12
      %s293 = sadd.s32 %s291, %s292
      %s294 = smul.addr %s293, 8
      %s295 = scalar_lea.vmem %s0, %s294
      %s296 = sadd.s32 %s21, 4
      %p297 = scmp.lt.s32.totalorder %s20, 1
      %s298 = scalar_select %p297, %s20, 1
      %p299 = scmp.lt.s32.totalorder %s296, 11
      %s300 = scalar_select %p299, %s296, 11
      %p301 = scmp.lt.s32.totalorder %s23, 0
      %s302 = scalar_select %p301, %s23, 0
      %s303 = sadd.s32 %s302, %s300
      %s304 = smul.addr %s298, 12
      %s305 = sadd.s32 %s303, %s304
      %s306 = smul.addr %s305, 8
      %s307 = scalar_lea.vmem %s1, %s306
      %s308 = sadd.s32 %s21, 4
      %s309 = sadd.s32 %s21, 8
      %p310 = scmp.lt.s32.totalorder %s20, 1
      %s311 = scalar_select %p310, %s20, 1
      %p312 = scmp.lt.s32.totalorder %s309, 11
      %s313 = scalar_select %p312, %s309, 11
      %p314 = scmp.lt.s32.totalorder %s23, 0
      %s315 = scalar_select %p314, %s23, 0
      %s316 = sadd.s32 %s315, %s313
      %s317 = smul.addr %s311, 12
      %s318 = sadd.s32 %s316, %s317
      %s319 = smul.addr %s318, 8
      %s320 = scalar_lea.vmem %s2, %s319
      %s321 = sadd.s32 %s21, 8
      %p322 = scmp.lt.s32.totalorder %s20, 1
      %s323 = scalar_select %p322, %s20, 1
      %p324 = scmp.lt.s32.totalorder %s21, 3
      %s325 = scalar_select %p324, %s21, 3
      %p326 = scmp.lt.s32.totalorder %s22, 0
      %s327 = scalar_select %p326, %s22, 0
      %s328 = sadd.s32 %s327, %s325
      %s329 = smul.addr %s323, 4
      %s330 = sadd.s32 %s328, %s329
      %s331 = smul.addr %s330, 8
      %s332 = scalar_lea.vmem %s3, %s331
      %p333 = scmp.eq.s32.totalorder %s23, 0
      // Predicated region
      $region33: #{multi_head_attention.4} parent=31 // pred_check
        %p334 = pneg %p333
      $region34: #{multi_head_attention.4} parent=31 // pred_check_branch
        %336 = sbr.rel (%p334) target = $region36
      $region35: #{multi_head_attention.4} parent=31 // pred_region
        %vm337 = vcmask 7168
        %338 = vst.msk [vmem:[#allocation2] sm:$0xff] %vm337, -inf
        %339 = vst.msk [vmem:[#allocation3] sm:$0xff] %vm337, 0.0
        %vm340 = vcmask 64512
        %341 = vst.msk [vmem:[#allocation4] sm:$0xff] %vm340, 0.0
      $region36: #{multi_head_attention.4} parent=31 // pred_fallthru
        _
      %s342 = smul.u32 %s23, 8
      %s343 = smul.u32 %s22, 8
      %s344 = sadd.s32 %s343, 7
      %p345 = scmp.le.s32.totalorder %s342, %s344
      // Predicated region
      $region37: #{multi_head_attention.4} parent=31 // pred_check
        %p346 = pneg %p345
      $region38: #{multi_head_attention.4} parent=31 // pred_check_branch
        %348 = sbr.rel (%p346) target = $region40
      $region39: #{multi_head_attention.4} parent=31 // pred_region
        %v349 = vld [vmem:[%s295] sm:$0xff]
        %v350 = vld [vmem:[%s307] sm:$0xff]
        %v351 = vld [vmem:[%s320] sm:$0xff]
        %vm352 = vcmask 64512
        %v354 = vsel %vm352, %v349, 0
        %v357 = vsel %vm352, %v350, 0
        %359 = vmatprep.subr.mxu0 0.0
        %360 = vmatpush1.xpose.msra.mxu0 %v357
        %361 = vmatprep.subr.mxu0 0.0
        %362 = vmatpush1.xpose.msra.mxu0 0.0
        %363 = vmatprep.subr.mxu0 0.0
        %364 = vmatpush1.xpose.msra.mxu0 0.0
        %365 = vmatprep.subr.mxu0 0.0
        %366 = vmatpush1.xpose.msra.mxu0 0.0
        %367 = vmatprep.subr.mxu0 0.0
        %368 = vmatpush1.xpose.msra.mxu0 0.0
        %369 = vmatprep.subr.mxu0 0.0
        %370 = vmatpush1.xpose.msra.mxu0 0.0
        %371 = vmatprep.subr.mxu0 0.0
        %372 = vmatpush1.xpose.msra.mxu0 0.0
        %373 = vmatprep.subr.mxu0 0.0
        %374 = vmatpush1.xpose.msra.mxu0 0.0
        %375 = vmatprep.subr.mxu0 0.0
        %376 = vmatpush1.xpose.msra.mxu0 0.0
        %377 = vmatprep.subr.mxu0 0.0
        %378 = vmatpush1.xpose.msra.mxu0 0.0
        %379 = vmatprep.subr.mxu0 0.0
        %380 = vmatpush1.xpose.msra.mxu0 0.0
        %381 = vmatprep.subr.mxu0 0.0
        %382 = vmatpush1.xpose.msra.mxu0 0.0
        %383 = vmatprep.subr.mxu0 0.0
        %384 = vmatpush1.xpose.msra.mxu0 0.0
        %385 = vmatprep.subr.mxu0 0.0
        %386 = vmatpush1.xpose.msra.mxu0 0.0
        %387 = vmatprep.subr.mxu0 0.0
        %388 = vmatpush1.xpose.msra.mxu0 0.0
        %389 = vmatprep.subr.mxu0 0.0
        %390 = vmatpush1.xpose.msra.mxu0 0.0
        %391 = vmatprep.subr.mxu0 0.0
        %392 = vmatpush1.xpose.msra.mxu0 0.0
        %393 = vmatprep.subr.mxu0 0.0
        %394 = vmatpush1.xpose.msra.mxu0 0.0
        %395 = vmatprep.subr.mxu0 0.0
        %396 = vmatpush1.xpose.msra.mxu0 0.0
        %397 = vmatprep.subr.mxu0 0.0
        %398 = vmatpush1.xpose.msra.mxu0 0.0
        %399 = vmatprep.subr.mxu0 0.0
        %400 = vmatpush1.xpose.msra.mxu0 0.0
        %401 = vmatprep.subr.mxu0 0.0
        %402 = vmatpush1.xpose.msra.mxu0 0.0
        %403 = vmatprep.subr.mxu0 0.0
        %404 = vmatpush1.xpose.msra.mxu0 0.0
        %405 = vmatprep.subr.mxu0 0.0
        %406 = vmatpush1.xpose.msra.mxu0 0.0
        %407 = vmatprep.subr.mxu0 0.0
        %408 = vmatpush1.xpose.msra.mxu0 0.0
        %409 = vmatprep.subr.mxu0 0.0
        %410 = vmatpush1.xpose.msra.mxu0 0.0
        %411 = vmatprep.subr.mxu0 0.0
        %412 = vmatpush1.xpose.msra.mxu0 0.0
        %413 = vmatprep.subr.mxu0 0.0
        %414 = vmatpush1.xpose.msra.mxu0 0.0
        %415 = vmatprep.subr.mxu0 0.0
        %416 = vmatpush1.xpose.msra.mxu0 0.0
        %417 = vmatprep.subr.mxu0 0.0
        %418 = vmatpush1.xpose.msra.mxu0 0.0
        %419 = vmatprep.subr.mxu0 0.0
        %420 = vmatpush1.xpose.msra.mxu0 0.0
        %421 = vmatprep.subr.mxu0 0.0
        %422 = vmatpush1.xpose.msra.mxu0 0.0
        %423 = vmatprep.mubr.f32.mxu0 0.0
        %424 = vmatmul.mubr.f32.gmra.mrb[0].mxu0 %v354
        %v425 = vpop.f32.mrb[0].mxu0
        %v426 = vadd.f32 0.0, %v425
        %v427 = vpop.f32.mrb[0].mxu0
        %428 = vdwg.mxu0
        %v429 = vmul.f32 %v426, 0.35355338
        %v430 = vlaneseq
        %v431 = vshrl.u32 %v430, 7
        %v432 = vstv %s343
        %v433 = vadd.s32 %v432, %v431
        %v434 = vlaneseq
        %v435 = vand.u32 %v434, 127
        %v436 = vstv %s342
        %v437 = vadd.s32 %v436, %v435
        %vm438 = vcmp.gt.s32.totalorder %v437, %v433
        %v439 = vsel %vm438, -3.4028235e+38, %v429
        %v440 = vld [vmem:[#allocation2] sm:$0xff]
        %v441 = vsel %vm352, %v439, -inf
        %442 = vmax.xlane.f32.xlu0 %v441
        %v443 = vpop.xlane.xlu0 %442
        %v444 = vmax.f32 %v440, %v443
        %v445 = vsub.f32 %v440, %v444
        %v446 = vmul.f32 %v445, 1.442695
        %v447 = vpow.pop %v446
        %449 = vset.pattern.permute.xlu0 0
        %450 = vperm.xlu0 %449, %v444
        %v451 = vpop.permute.xlu0 %450
        %v453 = vsub.f32 %v439, %v451
        %v454 = vmul.f32 %v453, 1.442695
        %v455 = vpow.pop %v454
        %v456 = vld [vmem:[#allocation3] sm:$0xff]
        %v457 = vmul.f32 %v447, %v456
        %v458 = vsel %vm352, %v455, 0.0
        %459 = vadd.xlane.f32.xlu0 %v458
        %v460 = vpop.xlane.xlu0 %459
        %v461 = vadd.f32 %v457, %v460
        %vm462 = vcmask 7168
        %463 = vst.msk [vmem:[#allocation3] sm:$0xff] %vm462, %v461
        %v464 = vld [vmem:[#allocation4] sm:$0xff]
        %466 = vset.pattern.permute.xlu0 0
        %467 = vperm.xlu0 %466, %v447
        %v468 = vpop.permute.xlu0 %467
        %v470 = vmul.f32 %v468, %v464
        %v472 = vsel %vm352, %v455, 0
        %474 = vmatprep.subr.mxu0 0.0
        %475 = vmatpush1.msra.mxu0 %v351
        %476 = vmatprep.subr.mxu0 0.0
        %477 = vmatpush1.msra.mxu0 0.0
        %478 = vmatprep.subr.mxu0 0.0
        %479 = vmatpush1.msra.mxu0 0.0
        %480 = vmatprep.subr.mxu0 0.0
        %481 = vmatpush1.msra.mxu0 0.0
        %482 = vmatprep.subr.mxu0 0.0
        %483 = vmatpush1.msra.mxu0 0.0
        %484 = vmatprep.subr.mxu0 0.0
        %485 = vmatpush1.msra.mxu0 0.0
        %486 = vmatprep.subr.mxu0 0.0
        %487 = vmatpush1.msra.mxu0 0.0
        %488 = vmatprep.subr.mxu0 0.0
        %489 = vmatpush1.msra.mxu0 0.0
        %490 = vmatprep.subr.mxu0 0.0
        %491 = vmatpush1.msra.mxu0 0.0
        %492 = vmatprep.subr.mxu0 0.0
        %493 = vmatpush1.msra.mxu0 0.0
        %494 = vmatprep.subr.mxu0 0.0
        %495 = vmatpush1.msra.mxu0 0.0
        %496 = vmatprep.subr.mxu0 0.0
        %497 = vmatpush1.msra.mxu0 0.0
        %498 = vmatprep.subr.mxu0 0.0
        %499 = vmatpush1.msra.mxu0 0.0
        %500 = vmatprep.subr.mxu0 0.0
        %501 = vmatpush1.msra.mxu0 0.0
        %502 = vmatprep.subr.mxu0 0.0
        %503 = vmatpush1.msra.mxu0 0.0
        %504 = vmatprep.subr.mxu0 0.0
        %505 = vmatpush1.msra.mxu0 0.0
        %506 = vmatprep.subr.mxu0 0.0
        %507 = vmatpush1.msra.mxu0 0.0
        %508 = vmatprep.subr.mxu0 0.0
        %509 = vmatpush1.msra.mxu0 0.0
        %510 = vmatprep.subr.mxu0 0.0
        %511 = vmatpush1.msra.mxu0 0.0
        %512 = vmatprep.subr.mxu0 0.0
        %513 = vmatpush1.msra.mxu0 0.0
        %514 = vmatprep.subr.mxu0 0.0
        %515 = vmatpush1.msra.mxu0 0.0
        %516 = vmatprep.subr.mxu0 0.0
        %517 = vmatpush1.msra.mxu0 0.0
        %518 = vmatprep.subr.mxu0 0.0
        %519 = vmatpush1.msra.mxu0 0.0
        %520 = vmatprep.subr.mxu0 0.0
        %521 = vmatpush1.msra.mxu0 0.0
        %522 = vmatprep.subr.mxu0 0.0
        %523 = vmatpush1.msra.mxu0 0.0
        %524 = vmatprep.subr.mxu0 0.0
        %525 = vmatpush1.msra.mxu0 0.0
        %526 = vmatprep.subr.mxu0 0.0
        %527 = vmatpush1.msra.mxu0 0.0
        %528 = vmatprep.subr.mxu0 0.0
        %529 = vmatpush1.msra.mxu0 0.0
        %530 = vmatprep.subr.mxu0 0.0
        %531 = vmatpush1.msra.mxu0 0.0
        %532 = vmatprep.subr.mxu0 0.0
        %533 = vmatpush1.msra.mxu0 0.0
        %534 = vmatprep.subr.mxu0 0.0
        %535 = vmatpush1.msra.mxu0 0.0
        %536 = vmatprep.subr.mxu0 0.0
        %537 = vmatpush1.msra.mxu0 0.0
        %538 = vmatprep.mubr.f32.mxu0 0.0
        %539 = vmatmul.mubr.f32.gmra.mrb[0].mxu0 %v472
        %v540 = vpop.f32.mrb[0].mxu0
        %v541 = vadd.f32 0.0, %v540
        %v542 = vpop.f32.mrb[0].mxu0
        %543 = vdwg.mxu0
        %v544 = vadd.f32 %v470, %v541
        %545 = vst.msk [vmem:[#allocation4] sm:$0xff] %vm352, %v544
        %546 = vst.msk [vmem:[#allocation2] sm:$0xff] %vm462, %v444
      $region40: #{multi_head_attention.4} parent=31 // pred_fallthru
        _
      // Predicated region
      $region41: #{multi_head_attention.4} parent=31 // pred_check
        %p547 = pneg %p333
      $region42: #{multi_head_attention.4} parent=31 // pred_check_branch
        %549 = sbr.rel (%p547) target = $region44
      $region43: #{multi_head_attention.4} parent=31 // pred_region
        %v550 = vld [vmem:[#allocation4] sm:$0xff]
        %v551 = vld [vmem:[#allocation3] sm:$0xff]
        %v552 = vrcp.pop %v551
        %554 = vset.pattern.permute.xlu0 0
        %555 = vperm.xlu0 %554, %v552
        %v556 = vpop.permute.xlu0 %555
        %v558 = vmul.f32 %v550, %v556
        %vm559 = vcmask 64512
        %560 = vst.msk [vmem:[%s332] sm:$0xff] %vm559, %v558
      $region44: #{multi_head_attention.4} parent=31 // pred_fallthru
        _
      %p561 = scmp.lt.s32.totalorder %s20, 1
      %s562 = scalar_select %p561, %s20, 1
      %p563 = scmp.lt.s32.totalorder %s21, 3
      %s564 = scalar_select %p563, %s21, 3
      %p565 = scmp.lt.s32.totalorder %s22, 0
      %s566 = scalar_select %p565, %s22, 0
      %s567 = sadd.s32 %s566, %s564
      %s568 = smul.addr %s562, 4
      %s569 = sadd.s32 %s567, %s568
      %s570 = smul.addr %s569, 8
      %s571 = scalar_lea.vmem %s3, %s570
      // Predicated region
      $region45: #{multi_head_attention.4} parent=31 // pred_check
        %p572 = pneg %p156
      $region46: #{multi_head_attention.4} parent=31 // pred_check_branch
        %574 = sbr.rel (%p572) target = $region48
      $region47: #{multi_head_attention.4} parent=31 // pred_region
        _
      $region48: #{multi_head_attention.4} parent=31 // pred_fallthru
        _
    $region32: #{multi_head_attention.4} parent=5 // pred_fallthru
      _
    %p575 = scmp.le.s32.totalorder 2, %s9
    // Predicated region
    $region49: #{multi_head_attention.4} parent=5 // pred_check
      %p576 = pneg %p575
    $region50: #{multi_head_attention.4} parent=5 // pred_check_branch
      %578 = sbr.rel (%p576) target = $region52
    $region51: #{multi_head_attention.4} parent=5 // pred_region
      %s579 = ssub.s32 %s9, 2
      // Predicated region
      $region53: #{multi_head_attention.4} parent=51 // pred_check
        %p580 = pneg %p162
      $region54: #{multi_head_attention.4} parent=51 // pred_check_branch
        %582 = sbr.rel (%p580) target = $region56
      $region55: #{multi_head_attention.4} parent=51 // pred_region
        %p583 = scmp.lt.s32.totalorder %s24, 1
        %s584 = scalar_select %p583, %s24, 1
        %p585 = scmp.lt.s32.totalorder %s25, 3
        %s586 = scalar_select %p585, %s25, 3
        %p587 = scmp.lt.s32.totalorder %s26, 0
        %s588 = scalar_select %p587, %s26, 0
        %s589 = sadd.s32 %s588, %s586
        %s590 = smul.addr %s584, 4
        %s591 = sadd.s32 %s589, %s590
        %s592 = smul.addr %s591, 8
        %s593 = scalar_lea.vmem %s3, %s592
      $region56: #{multi_head_attention.4} parent=51 // pred_fallthru
        _
    $region52: #{multi_head_attention.4} parent=5 // pred_fallthru
      _
  $region6: #{multi_head_attention.4} parent=0 // loop_footer
    %s13 = sadd.s32 1, %s9
  $region7: #{multi_head_attention.4} parent=0 // loop_footer_branch
    %8 = sbr.rel target = $region3
  $region8: #{multi_head_attention.4} parent=0 // loop_exit
    _

</llo_original>
